<compile_context>
chip_gen: v7x
topology: tpu7x:2x2x1
jax: 0.10.0
libtpu: 0.0.40
codegen_flags: <defaults>
</compile_context>

<pallas_src>
import jax
import jax.numpy as jnp
from jax.experimental import pallas as pl
from jax.experimental.pallas import tpu as pltpu

_LANE = 128      # last-dim tiling unit
_SUBLANE = 8     # second-to-last-dim tiling unit (f32)


def _round_up(n: int, m: int) -> int:
    return ((n + m - 1) // m) * m


# ----------------------------------------------------------------------------
# Kernel
# ----------------------------------------------------------------------------
def _make_mlp_kernel(n_linear_layers: int, negative_slope: float = 0.01):
    """Kernel body for an MLP with `n_linear_layers` Linear layers.

    Ref order: (x_ref, w0_ref, b0_ref, w1_ref, b1_ref, ..., out_ref).
    LeakyReLU(0.01) is applied after every Linear except the last one.
    Matmul operands are cast to the stored weight dtype (f32 or bf16); the
    accumulation and all elementwise math stay in f32 (safe on v5e too).
    """

    def kernel(*refs):
        x_ref = refs[0]
        out_ref = refs[-1]
        wb_refs = refs[1:-1]
        assert len(wb_refs) == 2 * n_linear_layers

        h = x_ref[...].astype(jnp.float32)               # [TB, in_dim]
        for i in range(n_linear_layers):
            w = wb_refs[2 * i][...]                      # [K_i, N_i_pad]
            b = wb_refs[2 * i + 1][...]                  # [1, N_i_pad] f32
            h = jnp.dot(h.astype(w.dtype), w,
                        preferred_element_type=jnp.float32) + b
            if i < n_linear_layers - 1:
                h = jnp.maximum(h, negative_slope * h)   # LeakyReLU(0.01)
        out_ref[...] = h.astype(out_ref.dtype)

    return kernel


# ----------------------------------------------------------------------------
# One-time parameter preparation (hoisted out of the hot path)
# ----------------------------------------------------------------------------
def prepare_attacker_params(params, param_dtype=jnp.float32):
    """Pad parameters once; returns (flat_params, meta).

    Args:
      params: list of (W, b); W is [in, out], b is [1, out] (y = x @ W + b,
              i.e. already transposed from PyTorch Linear's [out, in] layout).
      param_dtype: storage/streaming dtype for the weight matrices
              (jnp.float32 or jnp.bfloat16).  Biases stay f32.

    Only output (N) feature dims are padded to 128; the first layer's K dim
    stays at the real input width so x is streamed at its natural width.
    """
    n_layers = len(params)
    dims = [params[0][0].shape[0]] + [w.shape[1] for w, _ in params]

    # Layout sanity check ([in, out] chaining).
    for i, (w, b) in enumerate(params):
        assert w.ndim == 2 and w.shape == (dims[i], dims[i + 1]), (
            "Weights must be [in, out] (transpose PyTorch Linear weights).")
        assert b.reshape(-1).shape[0] == dims[i + 1]

    pdims = [dims[0]] + [_round_up(d, _LANE) for d in dims[1:]]

    flat = []
    for i, (w, b) in enumerate(params):
        kdim, ndim = pdims[i], pdims[i + 1]
        wp = jnp.zeros((kdim, ndim), param_dtype)
        wp = wp.at[: w.shape[0], : w.shape[1]].set(w.astype(param_dtype))
        bp = jnp.zeros((1, ndim), jnp.float32)
        bp = bp.at[:, : dims[i + 1]].set(b.reshape(1, -1).astype(jnp.float32))
        flat.append(wp)
        flat.append(bp)

    meta = dict(dims=dims, pdims=pdims, n_layers=n_layers,
                param_dtype=jnp.dtype(param_dtype))
    return flat, meta


# ----------------------------------------------------------------------------
# Forward wrapper
# ----------------------------------------------------------------------------
def attacker_forward(x, params, *, batch_tile: int = 1024):
    """Run the Attacker MLP forward pass as a single Pallas TPU kernel.

    Args:
      x: [batch, sensors + noise_size] float32.
      params: either the raw list of (W, b) pairs (W: [in, out], b: [1, out])
              or the (flat_params, meta) tuple from prepare_attacker_params.
      batch_tile: maximum rows per grid step.

    Returns:
      [batch, actuators * n_coeff] float32.
    """
    if (isinstance(params, tuple) and len(params) == 2
            and isinstance(params[1], dict)):
        flat_params, meta = params
    else:
        flat_params, meta = prepare_attacker_params(params)

    dims, pdims = meta["dims"], meta["pdims"]
    n_layers = meta["n_layers"]
    w_itemsize = meta["param_dtype"].itemsize

    batch, in_dim = x.shape
    assert in_dim == dims[0], "x feature dim does not match the first layer."
    out_dim = dims[-1]
    out_pad = pdims[-1]

    # --- Batch tiling: >=2 blocks when batch permits (v7x megacore), tile
    # sized from cdiv(batch, n_blocks) so padding is at most 7 rows per block.
    max_blocks = max(1, batch // _SUBLANE)            # each block needs >=8 rows
    want_blocks = max(2, pl.cdiv(batch, batch_tile))
    n_blocks = min(want_blocks, max_blocks)
    tb = _round_up(pl.cdiv(batch, n_blocks), _SUBLANE)
    batch_pad = tb * n_blocks
    grid = (n_blocks,)

    xp = x.astype(jnp.float32)
    if batch_pad != batch:
        xp = jnp.pad(xp, ((0, batch_pad - batch), (0, 0)))

    # --- VMEM budget: resident weights (+biases), double-buffered x/out tiles,
    # plus headroom for in-kernel activation temporaries.
    weight_bytes = sum(pdims[i] * pdims[i + 1] * w_itemsize + pdims[i + 1] * 4
                       for i in range(n_layers))
    act_bytes = 2 * tb * in_dim * 4 + 2 * tb * out_pad * 4
    scratch_bytes = 4 * tb * max(pdims[1:]) * 4
    vmem_limit = int(min(max(int((2 * weight_bytes + act_bytes + scratch_bytes)
                                 * 1.25), 8 << 20), 64 << 20))

    # --- Advisory cost estimate for the surrounding XLA schedule.
    flops = 2 * batch_pad * sum(pdims[i] * pdims[i + 1] for i in range(n_layers))
    bytes_accessed = int(batch_pad * in_dim * 4 + weight_bytes
                         + batch_pad * out_pad * 4)
    cost = pl.CostEstimate(flops=int(flops), transcendentals=0,
                           bytes_accessed=bytes_accessed)

    kernel = _make_mlp_kernel(n_layers)
    x_spec = pl.BlockSpec((tb, in_dim), lambda i: (i, 0))
    out_spec = pl.BlockSpec((tb, out_pad), lambda i: (i, 0))

    def _build(single_buffer_weights: bool):
        extra = ({"pipeline_mode": pl.Buffered(1)}
                 if single_buffer_weights else {})
        in_specs = [x_spec]
        for li in range(n_layers):
            in_specs.append(pl.BlockSpec((pdims[li], pdims[li + 1]),
                                         lambda i: (0, 0), **extra))
            in_specs.append(pl.BlockSpec((1, pdims[li + 1]),
                                         lambda i: (0, 0), **extra))
        return pl.pallas_call(
            kernel,
            out_shape=jax.ShapeDtypeStruct((batch_pad, out_pad), jnp.float32),
            grid=grid,
            in_specs=in_specs,
            out_specs=out_spec,
            compiler_params=pltpu.CompilerParams(
                dimension_semantics=("parallel",),
                vmem_limit_bytes=vmem_limit),
            cost_estimate=cost,
        )

    try:
        # Weights/biases never change across grid steps -> single VMEM buffer.
        out_padded = _build(True)(xp, *flat_params)
    except Exception:
        # Fallback: default double-buffering (still correct, slightly more VMEM).
        out_padded = _build(False)(xp, *flat_params)

    return out_padded[:batch, :out_dim]


# ----------------------------------------------------------------------------
# Deterministic parameter initialization (synthetic; no checkpoint loading)
# ----------------------------------------------------------------------------
def init_attacker_params(key, sensors, noise_size, n_hidden_layers, layer_size,
                         actuators, n_coeff):
    assert n_hidden_layers > 0
    input_dim = sensors + noise_size
    output_dim = actuators * n_coeff

    dims = [input_dim] + [layer_size] * n_hidden_layers + [output_dim]
    params = []
    for i in range(len(dims) - 1):
        fan_in, fan_out = dims[i], dims[i + 1]
        key, wk, bk = jax.random.split(key, 3)
        scale = 1.0 / jnp.sqrt(jnp.float32(fan_in))
        w = jax.random.uniform(wk, (fan_in, fan_out), jnp.float32, -scale, scale)
        b = jax.random.uniform(bk, (1, fan_out), jnp.float32, -scale, scale)
        params.append((w, b))
    return params


# Pure-JAX reference (for a correctness sanity check).
def attacker_reference(x, params, negative_slope=0.01):
    h = x
    for i, (w, b) in enumerate(params):
        h = h @ w + b
        if i < len(params) - 1:
            h = jnp.where(h > 0, h, negative_slope * h)
    return h


if __name__ == "__main__":
    # Small shapes consistent with the module's constructor.
    sensors = 4
    noise_size = 4          # -> input_layer_size = 8
    n_hidden_layers = 2
    layer_size = 32
    actuators = 2
    n_coeff = 4             # -> output_layer_size = 8
    batch = 64              # small, but enough to exercise a 2-block grid

    key = jax.random.PRNGKey(0)
    key, xk = jax.random.split(key)
    x = jax.random.normal(xk, (batch, sensors + noise_size), dtype=jnp.float32)

    params = init_attacker_params(
        key, sensors, noise_size, n_hidden_layers, layer_size, actuators, n_coeff
    )
    ref = attacker_reference(x, params)

    # f32 parameters (default; bit-accurate vs. the reference).
    prepared_f32 = prepare_attacker_params(params, jnp.float32)
    out_f32 = jax.block_until_ready(attacker_forward(x, prepared_f32))
    assert out_f32.shape == (batch, actuators * n_coeff)
    assert jnp.allclose(out_f32, ref, atol=1e-5, rtol=1e-5)

    # bf16 weight storage/streaming (v6e/v7x bandwidth/VMEM optimization),
    # f32 accumulation — checked with a correspondingly looser tolerance.
    prepared_bf16 = prepare_attacker_params(params, jnp.bfloat16)
    out_bf16 = jax.block_until_ready(attacker_forward(x, prepared_bf16))
    assert out_bf16.shape == (batch, actuators * n_coeff)
    assert jnp.allclose(out_bf16, ref, atol=1e-1, rtol=5e-2)

    print("KERNEL_OK")
</pallas_src>

<mosaic_0001>
module attributes {stable_mosaic.version = 11 : i64} {
  func.func @kernel(%arg0: i32, %arg1: memref<32x8xf32, #tpu.memory_space<vmem>>, %arg2: memref<8x128xf32, #tpu.memory_space<vmem>>, %arg3: memref<1x128xf32, #tpu.memory_space<vmem>>, %arg4: memref<128x128xf32, #tpu.memory_space<vmem>>, %arg5: memref<1x128xf32, #tpu.memory_space<vmem>>, %arg6: memref<128x128xf32, #tpu.memory_space<vmem>>, %arg7: memref<1x128xf32, #tpu.memory_space<vmem>>, %arg8: memref<32x128xf32, #tpu.memory_space<vmem>>) attributes {dimension_semantics = [#tpu.dimension_semantics<parallel>], iteration_bounds = array<i64: 2>, scalar_prefetch = 0 : i64, scratch_operands = 0 : i64, tpu.core_type = #tpu.core_type<tc>, window_params = [{transform_indices = @transform_0, window_bounds = array<i64: 32, 8>}, {pipeline_mode = #tpu.pipeline_mode<synchronous>, transform_indices = @transform_1, window_bounds = array<i64: 8, 128>}, {pipeline_mode = #tpu.pipeline_mode<synchronous>, transform_indices = @transform_2, window_bounds = array<i64: 1, 128>}, {pipeline_mode = #tpu.pipeline_mode<synchronous>, transform_indices = @transform_3, window_bounds = array<i64: 128, 128>}, {pipeline_mode = #tpu.pipeline_mode<synchronous>, transform_indices = @transform_4, window_bounds = array<i64: 1, 128>}, {pipeline_mode = #tpu.pipeline_mode<synchronous>, transform_indices = @transform_5, window_bounds = array<i64: 128, 128>}, {pipeline_mode = #tpu.pipeline_mode<synchronous>, transform_indices = @transform_6, window_bounds = array<i64: 1, 128>}, {transform_indices = @transform_7, window_bounds = array<i64: 32, 128>}]} {
    %c0 = arith.constant 0 : index
    %c0_0 = arith.constant 0 : index
    %0 = vector.load %arg1[%c0, %c0_0] : memref<32x8xf32, #tpu.memory_space<vmem>>, vector<32x8xf32>
    %c0_1 = arith.constant 0 : index
    %c0_2 = arith.constant 0 : index
    %1 = vector.load %arg2[%c0_1, %c0_2] : memref<8x128xf32, #tpu.memory_space<vmem>>, vector<8x128xf32>
    %c0_3 = arith.constant 0 : index
    %c0_4 = arith.constant 0 : index
    %2 = vector.load %arg3[%c0_3, %c0_4] : memref<1x128xf32, #tpu.memory_space<vmem>>, vector<1x128xf32>
    %cst = arith.constant dense<0.000000e+00> : vector<32x128xf32>
    %3 = tpu.matmul %0, %1, %cst {dimension_numbers = #tpu.dot_dimension_numbers<[1], [0], [0], [1], [0, 0, 1, 1], [], []>} : vector<32x8xf32>, vector<8x128xf32>, vector<32x128xf32> -> vector<32x128xf32>
    %4 = vector.broadcast %2 : vector<1x128xf32> to vector<32x128xf32>
    %5 = arith.addf %3, %4 : vector<32x128xf32>
    %cst_5 = arith.constant 0.00999999977 : f32
    %6 = vector.broadcast %cst_5 : f32 to vector<32x128xf32>
    %7 = arith.mulf %6, %5 : vector<32x128xf32>
    %8 = arith.maximumf %5, %7 : vector<32x128xf32>
    %c0_6 = arith.constant 0 : index
    %c0_7 = arith.constant 0 : index
    %9 = vector.load %arg4[%c0_6, %c0_7] : memref<128x128xf32, #tpu.memory_space<vmem>>, vector<128x128xf32>
    %c0_8 = arith.constant 0 : index
    %c0_9 = arith.constant 0 : index
    %10 = vector.load %arg5[%c0_8, %c0_9] : memref<1x128xf32, #tpu.memory_space<vmem>>, vector<1x128xf32>
    %cst_10 = arith.constant dense<0.000000e+00> : vector<32x128xf32>
    %11 = tpu.matmul %8, %9, %cst_10 {dimension_numbers = #tpu.dot_dimension_numbers<[1], [0], [0], [1], [0, 0, 1, 1], [], []>} : vector<32x128xf32>, vector<128x128xf32>, vector<32x128xf32> -> vector<32x128xf32>
    %12 = vector.broadcast %10 : vector<1x128xf32> to vector<32x128xf32>
    %13 = arith.addf %11, %12 : vector<32x128xf32>
    %cst_11 = arith.constant 0.00999999977 : f32
    %14 = vector.broadcast %cst_11 : f32 to vector<32x128xf32>
    %15 = arith.mulf %14, %13 : vector<32x128xf32>
    %16 = arith.maximumf %13, %15 : vector<32x128xf32>
    %c0_12 = arith.constant 0 : index
    %c0_13 = arith.constant 0 : index
    %17 = vector.load %arg6[%c0_12, %c0_13] : memref<128x128xf32, #tpu.memory_space<vmem>>, vector<128x128xf32>
    %c0_14 = arith.constant 0 : index
    %c0_15 = arith.constant 0 : index
    %18 = vector.load %arg7[%c0_14, %c0_15] : memref<1x128xf32, #tpu.memory_space<vmem>>, vector<1x128xf32>
    %cst_16 = arith.constant dense<0.000000e+00> : vector<32x128xf32>
    %19 = tpu.matmul %16, %17, %cst_16 {dimension_numbers = #tpu.dot_dimension_numbers<[1], [0], [0], [1], [0, 0, 1, 1], [], []>} : vector<32x128xf32>, vector<128x128xf32>, vector<32x128xf32> -> vector<32x128xf32>
    %20 = vector.broadcast %18 : vector<1x128xf32> to vector<32x128xf32>
    %21 = arith.addf %19, %20 : vector<32x128xf32>
    %c0_17 = arith.constant 0 : index
    %c0_18 = arith.constant 0 : index
    %22 = vector.load %arg8[%c0_17, %c0_18] : memref<32x128xf32, #tpu.memory_space<vmem>>, vector<32x128xf32>
    tpu.vector_store %arg8[%c0_17, %c0_18], %21 {strides = array<i32>} : memref<32x128xf32, #tpu.memory_space<vmem>>, vector<32x128xf32>,
    return
  }
  func.func @transform_0(%arg0: i32) -> (i32, i32) {
    %c0_i32 = arith.constant 0 : i32
    %c0_i32_0 = arith.constant 0 : i32
    return %arg0, %c0_i32 : i32, i32
  }
  func.func @transform_1(%arg0: i32) -> (i32, i32) {
    %c0_i32 = arith.constant 0 : i32
    %c0_i32_0 = arith.constant 0 : i32
    %c0_i32_1 = arith.constant 0 : i32
    return %c0_i32, %c0_i32_0 : i32, i32
  }
  func.func @transform_2(%arg0: i32) -> (i32, i32) {
    %c0_i32 = arith.constant 0 : i32
    %c0_i32_0 = arith.constant 0 : i32
    %c0_i32_1 = arith.constant 0 : i32
    return %c0_i32, %c0_i32_0 : i32, i32
  }
  func.func @transform_3(%arg0: i32) -> (i32, i32) {
    %c0_i32 = arith.constant 0 : i32
    %c0_i32_0 = arith.constant 0 : i32
    %c0_i32_1 = arith.constant 0 : i32
    return %c0_i32, %c0_i32_0 : i32, i32
  }
  func.func @transform_4(%arg0: i32) -> (i32, i32) {
    %c0_i32 = arith.constant 0 : i32
    %c0_i32_0 = arith.constant 0 : i32
    %c0_i32_1 = arith.constant 0 : i32
    return %c0_i32, %c0_i32_0 : i32, i32
  }
  func.func @transform_5(%arg0: i32) -> (i32, i32) {
    %c0_i32 = arith.constant 0 : i32
    %c0_i32_0 = arith.constant 0 : i32
    %c0_i32_1 = arith.constant 0 : i32
    return %c0_i32, %c0_i32_0 : i32, i32
  }
  func.func @transform_6(%arg0: i32) -> (i32, i32) {
    %c0_i32 = arith.constant 0 : i32
    %c0_i32_0 = arith.constant 0 : i32
    %c0_i32_1 = arith.constant 0 : i32
    return %c0_i32, %c0_i32_0 : i32, i32
  }
  func.func @transform_7(%arg0: i32) -> (i32, i32) {
    %c0_i32 = arith.constant 0 : i32
    %c0_i32_0 = arith.constant 0 : i32
    return %arg0, %c0_i32 : i32, i32
  }
}

module attributes {stable_mosaic.version = 11 : i64} {
  func.func @kernel(%arg0: i32, %arg1: memref<32x8xf32, #tpu.memory_space<vmem>>, %arg2: memref<8x128xf32, #tpu.memory_space<vmem>>, %arg3: memref<1x128xf32, #tpu.memory_space<vmem>>, %arg4: memref<128x128xf32, #tpu.memory_space<vmem>>, %arg5: memref<1x128xf32, #tpu.memory_space<vmem>>, %arg6: memref<128x128xf32, #tpu.memory_space<vmem>>, %arg7: memref<1x128xf32, #tpu.memory_space<vmem>>, %arg8: memref<32x128xf32, #tpu.memory_space<vmem>>) attributes {dimension_semantics = [#tpu.dimension_semantics<parallel>], iteration_bounds = array<i64: 2>, scalar_prefetch = 0 : i64, scratch_operands = 0 : i64, tpu.core_type = #tpu.core_type<tc>, window_params = [{transform_indices = @transform_0, window_bounds = array<i64: 32, 8>}, {pipeline_mode = #tpu.pipeline_mode<synchronous>, transform_indices = @transform_1, window_bounds = array<i64: 8, 128>}, {pipeline_mode = #tpu.pipeline_mode<synchronous>, transform_indices = @transform_2, window_bounds = array<i64: 1, 128>}, {pipeline_mode = #tpu.pipeline_mode<synchronous>, transform_indices = @transform_3, window_bounds = array<i64: 128, 128>}, {pipeline_mode = #tpu.pipeline_mode<synchronous>, transform_indices = @transform_4, window_bounds = array<i64: 1, 128>}, {pipeline_mode = #tpu.pipeline_mode<synchronous>, transform_indices = @transform_5, window_bounds = array<i64: 128, 128>}, {pipeline_mode = #tpu.pipeline_mode<synchronous>, transform_indices = @transform_6, window_bounds = array<i64: 1, 128>}, {transform_indices = @transform_7, window_bounds = array<i64: 32, 128>}]} {
    %c0 = arith.constant 0 : index
    %c0_0 = arith.constant 0 : index
    %0 = vector.load %arg1[%c0, %c0_0] : memref<32x8xf32, #tpu.memory_space<vmem>>, vector<32x8xf32>
    %c0_1 = arith.constant 0 : index
    %c0_2 = arith.constant 0 : index
    %1 = vector.load %arg2[%c0_1, %c0_2] : memref<8x128xf32, #tpu.memory_space<vmem>>, vector<8x128xf32>
    %c0_3 = arith.constant 0 : index
    %c0_4 = arith.constant 0 : index
    %2 = vector.load %arg3[%c0_3, %c0_4] : memref<1x128xf32, #tpu.memory_space<vmem>>, vector<1x128xf32>
    %cst = arith.constant dense<0.000000e+00> : vector<32x128xf32>
    %3 = tpu.matmul %0, %1, %cst {dimension_numbers = #tpu.dot_dimension_numbers<[1], [0], [0], [1], [0, 0, 1, 1], [], []>} : vector<32x8xf32>, vector<8x128xf32>, vector<32x128xf32> -> vector<32x128xf32>
    %4 = vector.broadcast %2 : vector<1x128xf32> to vector<32x128xf32>
    %5 = arith.addf %3, %4 : vector<32x128xf32>
    %cst_5 = arith.constant 0.00999999977 : f32
    %6 = vector.broadcast %cst_5 : f32 to vector<32x128xf32>
    %7 = arith.mulf %6, %5 : vector<32x128xf32>
    %8 = arith.maximumf %5, %7 : vector<32x128xf32>
    %c0_6 = arith.constant 0 : index
    %c0_7 = arith.constant 0 : index
    %9 = vector.load %arg4[%c0_6, %c0_7] : memref<128x128xf32, #tpu.memory_space<vmem>>, vector<128x128xf32>
    %c0_8 = arith.constant 0 : index
    %c0_9 = arith.constant 0 : index
    %10 = vector.load %arg5[%c0_8, %c0_9] : memref<1x128xf32, #tpu.memory_space<vmem>>, vector<1x128xf32>
    %cst_10 = arith.constant dense<0.000000e+00> : vector<32x128xf32>
    %11 = tpu.matmul %8, %9, %cst_10 {dimension_numbers = #tpu.dot_dimension_numbers<[1], [0], [0], [1], [0, 0, 1, 1], [], []>} : vector<32x128xf32>, vector<128x128xf32>, vector<32x128xf32> -> vector<32x128xf32>
    %12 = vector.broadcast %10 : vector<1x128xf32> to vector<32x128xf32>
    %13 = arith.addf %11, %12 : vector<32x128xf32>
    %cst_11 = arith.constant 0.00999999977 : f32
    %14 = vector.broadcast %cst_11 : f32 to vector<32x128xf32>
    %15 = arith.mulf %14, %13 : vector<32x128xf32>
    %16 = arith.maximumf %13, %15 : vector<32x128xf32>
    %c0_12 = arith.constant 0 : index
    %c0_13 = arith.constant 0 : index
    %17 = vector.load %arg6[%c0_12, %c0_13] : memref<128x128xf32, #tpu.memory_space<vmem>>, vector<128x128xf32>
    %c0_14 = arith.constant 0 : index
    %c0_15 = arith.constant 0 : index
    %18 = vector.load %arg7[%c0_14, %c0_15] : memref<1x128xf32, #tpu.memory_space<vmem>>, vector<1x128xf32>
    %cst_16 = arith.constant dense<0.000000e+00> : vector<32x128xf32>
    %19 = tpu.matmul %16, %17, %cst_16 {dimension_numbers = #tpu.dot_dimension_numbers<[1], [0], [0], [1], [0, 0, 1, 1], [], []>} : vector<32x128xf32>, vector<128x128xf32>, vector<32x128xf32> -> vector<32x128xf32>
    %20 = vector.broadcast %18 : vector<1x128xf32> to vector<32x128xf32>
    %21 = arith.addf %19, %20 : vector<32x128xf32>
    %c0_17 = arith.constant 0 : index
    %c0_18 = arith.constant 0 : index
    %22 = vector.load %arg8[%c0_17, %c0_18] : memref<32x128xf32, #tpu.memory_space<vmem>>, vector<32x128xf32>
    tpu.vector_store %arg8[%c0_17, %c0_18], %21 {strides = array<i32>} : memref<32x128xf32, #tpu.memory_space<vmem>>, vector<32x128xf32>,
    return
  }
  func.func @transform_0(%arg0: i32) -> (i32, i32) {
    %c0_i32 = arith.constant 0 : i32
    %c0_i32_0 = arith.constant 0 : i32
    return %arg0, %c0_i32 : i32, i32
  }
  func.func @transform_1(%arg0: i32) -> (i32, i32) {
    %c0_i32 = arith.constant 0 : i32
    %c0_i32_0 = arith.constant 0 : i32
    %c0_i32_1 = arith.constant 0 : i32
    return %c0_i32, %c0_i32_0 : i32, i32
  }
  func.func @transform_2(%arg0: i32) -> (i32, i32) {
    %c0_i32 = arith.constant 0 : i32
    %c0_i32_0 = arith.constant 0 : i32
    %c0_i32_1 = arith.constant 0 : i32
    return %c0_i32, %c0_i32_0 : i32, i32
  }
  func.func @transform_3(%arg0: i32) -> (i32, i32) {
    %c0_i32 = arith.constant 0 : i32
    %c0_i32_0 = arith.constant 0 : i32
    %c0_i32_1 = arith.constant 0 : i32
    return %c0_i32, %c0_i32_0 : i32, i32
  }
  func.func @transform_4(%arg0: i32) -> (i32, i32) {
    %c0_i32 = arith.constant 0 : i32
    %c0_i32_0 = arith.constant 0 : i32
    %c0_i32_1 = arith.constant 0 : i32
    return %c0_i32, %c0_i32_0 : i32, i32
  }
  func.func @transform_5(%arg0: i32) -> (i32, i32) {
    %c0_i32 = arith.constant 0 : i32
    %c0_i32_0 = arith.constant 0 : i32
    %c0_i32_1 = arith.constant 0 : i32
    return %c0_i32, %c0_i32_0 : i32, i32
  }
  func.func @transform_6(%arg0: i32) -> (i32, i32) {
    %c0_i32 = arith.constant 0 : i32
    %c0_i32_0 = arith.constant 0 : i32
    %c0_i32_1 = arith.constant 0 : i32
    return %c0_i32, %c0_i32_0 : i32, i32
  }
  func.func @transform_7(%arg0: i32) -> (i32, i32) {
    %c0_i32 = arith.constant 0 : i32
    %c0_i32_0 = arith.constant 0 : i32
    return %arg0, %c0_i32 : i32, i32
  }
}

</mosaic_0001>

<llo_original>
// kernel: tpu_custom_call.1
$region0: #{tpu_custom_call.1}
  #allocation0 [shape = 'u32[]', space=smem, size = 0x4, offset = 0x4, fixed_abs, tag = 'smem constant byte address 0x4 - core index']
  #allocation1 [shape = 'u32[144,128]{1,0:T(1,128)}', space=vmem, size = 0x12000, scoped, tag = 'internal scratch']
  %s0 = inlined_call_operand.vmem [shape: f32[64,8], index: 0, kind: input, shape index: {}]
  %s1 = inlined_call_operand.vmem [shape: f32[8,128], index: 1, kind: input, shape index: {}]
  %s2 = inlined_call_operand.vmem [shape: f32[1,128], index: 2, kind: input, shape index: {}]
  %s3 = inlined_call_operand.hbm [shape: f32[128,128], index: 3, kind: input, shape index: {}]
  %s4 = inlined_call_operand.vmem [shape: f32[1,128], index: 4, kind: input, shape index: {}]
  %s5 = inlined_call_operand.hbm [shape: f32[128,128], index: 5, kind: input, shape index: {}]
  %s6 = inlined_call_operand.vmem [shape: f32[1,128], index: 6, kind: input, shape index: {}]
  %s7 = inlined_call_operand.hbm [shape: f32[64,128], index: 7, kind: output, shape index: {}]
  %s8 = sld [smem:[#allocation0]]
  $region69: #{tpu_custom_call.1} parent=0
    _
  %s10 = ssub.s32 1, %s8
  %s11 = scalar_select 0, %s10, %s8
  $region1: #{tpu_custom_call.1} parent=0
    #allocation2 [shape = 'u8[65536]{0}', space=vmem, size = 0x10000, scoped, tag = 'input window, operand 3, single buffered']
    #allocation3 [shape = 's32[2]{0}', space=sflag, size = 0x8, scoped, tag = 'scoped memory for tpu_custom_call.1']
    #allocation4 [shape = 's32[2]{0}', space=sflag, size = 0x8, scoped, tag = 'scoped memory for tpu_custom_call.1']
    #allocation5 [shape = 'u8[65536]{0}', space=vmem, size = 0x10000, scoped, tag = 'input window, operand 5, single buffered']
    #allocation6 [shape = 's32[1]{0}', space=sflag, size = 0x4, scoped, tag = 'scoped memory for tpu_custom_call.1']
    #allocation7 [shape = 'u8[32768]{0}', space=vmem, size = 0x8000, scoped, tag = 'output window, operand 0']
    %12 = vsyncpa [#allocation3], 0
    %13 = vsyncpa [#allocation6], 0
    %14 = vsyncpa [#allocation4], 0
    %s15 = scalar_lea.sflag [#allocation4], 1
    %16 = vsyncpa %s15, 0
    loop: start=0, step=1, limit=4
    $region2: #{tpu_custom_call.1} parent=1 // loop_pre_header
      _
    $region3: #{tpu_custom_call.1} parent=1 // loop_header
      %s18 = sphi 0, %s22
      %p19 = scmp.ge.s32.totalorder %s18, 4
      %s28 = sphi 0, %s30
      %s31 = sphi 0, %s28
      %s32 = sphi 0, %s31
      %s48 = sphi 0, %s32
      %s52 = sphi 0, %s52
      %s54 = sphi 0, %s52
      %s55 = sphi 0, %s54
      %s69 = sphi 0, %s55
      %s73 = sphi 0, %s73
      %s75 = sphi 0, %s73
      %s76 = sphi 0, %s75
      %s90 = sphi 0, %s76
      %s94 = sphi 0, %s94
      %s96 = sphi 0, %s94
      %s97 = sphi 0, %s96
      %s111 = sphi 0, %s97
      %s115 = sphi 0, %s115
      %s117 = sphi 0, %s115
      %s118 = sphi 0, %s117
      %s132 = sphi 0, %s118
      %s136 = sphi 0, %s136
      %s138 = sphi 0, %s136
      %s139 = sphi 0, %s138
      %s153 = sphi 0, %s139
      %s157 = sphi 0, %s157
      %s159 = sphi 0, %s157
      %s160 = sphi 0, %s159
      %s174 = sphi 0, %s160
      %s180 = sphi 0, %s182
      %s183 = sphi 0, %s180
      %s184 = sphi 0, %s183
      %s200 = sphi 0, %s184
    $region4: #{tpu_custom_call.1} parent=1 // loop_header_branch
      %21 = sbr.rel (%p19) target = $region8
    $region5: #{tpu_custom_call.1} parent=1 // loop_body
      %s23 = ssub.s32 %s18, 1
      %s24 = ssub.s32 %s18, 2
      %s25 = sadd.s32 %s18, 1
      %s26 = ssub.s32 %s18, %s25
      %p27 = scmp.eq.s32.totalorder %s26, 0
      %s29 = sadd.s32 %s28, 1
      %s30 = scalar_select %p27, %s28, %s29
      %p33 = pneg %p27
      %p34 = scmp.eq.s32.totalorder %s18, 1
      %p35 = por %p33, %p34
      %p36 = scmp.ne.s32.totalorder %s28, %s31
      %p37 = scmp.eq.s32.totalorder %s18, 0
      %p38 = por %p36, %p37
      %p39 = scmp.ne.s32.totalorder %s28, %s31
      %p40 = scmp.eq.s32.totalorder %s23, 1
      %p41 = por %p39, %p40
      %p42 = scmp.ne.s32.totalorder %s31, %s32
      %p43 = scmp.eq.s32.totalorder %s23, 0
      %p44 = por %p42, %p43
      %p45 = scmp.ne.s32.totalorder %s31, %s32
      %p46 = scmp.eq.s32.totalorder %s24, 1
      %p47 = por %p45, %p46
      %p49 = scmp.ne.s32.totalorder %s32, %s48
      %p50 = scmp.eq.s32.totalorder %s24, 0
      %p51 = por %p49, %p50
      %s53 = sadd.s32 %s52, 1
      %p56 = scmp.eq.s32.totalorder %s18, 1
      %p57 = scmp.ne.s32.totalorder %s52, %s54
      %p58 = scmp.eq.s32.totalorder %s18, 0
      %p59 = por %p57, %p58
      %p60 = scmp.ne.s32.totalorder %s52, %s54
      %p61 = scmp.eq.s32.totalorder %s23, 1
      %p62 = por %p60, %p61
      %p63 = scmp.ne.s32.totalorder %s54, %s55
      %p64 = scmp.eq.s32.totalorder %s23, 0
      %p65 = por %p63, %p64
      %p66 = scmp.ne.s32.totalorder %s54, %s55
      %p67 = scmp.eq.s32.totalorder %s24, 1
      %p68 = por %p66, %p67
      %p70 = scmp.ne.s32.totalorder %s55, %s69
      %p71 = scmp.eq.s32.totalorder %s24, 0
      %p72 = por %p70, %p71
      %s74 = sadd.s32 %s73, 1
      %p77 = scmp.eq.s32.totalorder %s18, 1
      %p78 = scmp.ne.s32.totalorder %s73, %s75
      %p79 = scmp.eq.s32.totalorder %s18, 0
      %p80 = por %p78, %p79
      %p81 = scmp.ne.s32.totalorder %s73, %s75
      %p82 = scmp.eq.s32.totalorder %s23, 1
      %p83 = por %p81, %p82
      %p84 = scmp.ne.s32.totalorder %s75, %s76
      %p85 = scmp.eq.s32.totalorder %s23, 0
      %p86 = por %p84, %p85
      %p87 = scmp.ne.s32.totalorder %s75, %s76
      %p88 = scmp.eq.s32.totalorder %s24, 1
      %p89 = por %p87, %p88
      %p91 = scmp.ne.s32.totalorder %s76, %s90
      %p92 = scmp.eq.s32.totalorder %s24, 0
      %p93 = por %p91, %p92
      %s95 = sadd.s32 %s94, 1
      %p98 = scmp.eq.s32.totalorder %s18, 1
      %p99 = scmp.ne.s32.totalorder %s94, %s96
      %p100 = scmp.eq.s32.totalorder %s18, 0
      %p101 = por %p99, %p100
      %p102 = scmp.ne.s32.totalorder %s94, %s96
      %p103 = scmp.eq.s32.totalorder %s23, 1
      %p104 = por %p102, %p103
      %p105 = scmp.ne.s32.totalorder %s96, %s97
      %p106 = scmp.eq.s32.totalorder %s23, 0
      %p107 = por %p105, %p106
      %p108 = scmp.ne.s32.totalorder %s96, %s97
      %p109 = scmp.eq.s32.totalorder %s24, 1
      %p110 = por %p108, %p109
      %p112 = scmp.ne.s32.totalorder %s97, %s111
      %p113 = scmp.eq.s32.totalorder %s24, 0
      %p114 = por %p112, %p113
      %s116 = sadd.s32 %s115, 1
      %p119 = scmp.eq.s32.totalorder %s18, 1
      %p120 = scmp.ne.s32.totalorder %s115, %s117
      %p121 = scmp.eq.s32.totalorder %s18, 0
      %p122 = por %p120, %p121
      %p123 = scmp.ne.s32.totalorder %s115, %s117
      %p124 = scmp.eq.s32.totalorder %s23, 1
      %p125 = por %p123, %p124
      %p126 = scmp.ne.s32.totalorder %s117, %s118
      %p127 = scmp.eq.s32.totalorder %s23, 0
      %p128 = por %p126, %p127
      %p129 = scmp.ne.s32.totalorder %s117, %s118
      %p130 = scmp.eq.s32.totalorder %s24, 1
      %p131 = por %p129, %p130
      %p133 = scmp.ne.s32.totalorder %s118, %s132
      %p134 = scmp.eq.s32.totalorder %s24, 0
      %p135 = por %p133, %p134
      %s137 = sadd.s32 %s136, 1
      %p140 = scmp.eq.s32.totalorder %s18, 1
      %p141 = scmp.ne.s32.totalorder %s136, %s138
      %p142 = scmp.eq.s32.totalorder %s18, 0
      %p143 = por %p141, %p142
      %p144 = scmp.ne.s32.totalorder %s136, %s138
      %p145 = scmp.eq.s32.totalorder %s23, 1
      %p146 = por %p144, %p145
      %p147 = scmp.ne.s32.totalorder %s138, %s139
      %p148 = scmp.eq.s32.totalorder %s23, 0
      %p149 = por %p147, %p148
      %p150 = scmp.ne.s32.totalorder %s138, %s139
      %p151 = scmp.eq.s32.totalorder %s24, 1
      %p152 = por %p150, %p151
      %p154 = scmp.ne.s32.totalorder %s139, %s153
      %p155 = scmp.eq.s32.totalorder %s24, 0
      %p156 = por %p154, %p155
      %s158 = sadd.s32 %s157, 1
      %p161 = scmp.eq.s32.totalorder %s18, 1
      %p162 = scmp.ne.s32.totalorder %s157, %s159
      %p163 = scmp.eq.s32.totalorder %s18, 0
      %p164 = por %p162, %p163
      %p165 = scmp.ne.s32.totalorder %s157, %s159
      %p166 = scmp.eq.s32.totalorder %s23, 1
      %p167 = por %p165, %p166
      %p168 = scmp.ne.s32.totalorder %s159, %s160
      %p169 = scmp.eq.s32.totalorder %s23, 0
      %p170 = por %p168, %p169
      %p171 = scmp.ne.s32.totalorder %s159, %s160
      %p172 = scmp.eq.s32.totalorder %s24, 1
      %p173 = por %p171, %p172
      %p175 = scmp.ne.s32.totalorder %s160, %s174
      %p176 = scmp.eq.s32.totalorder %s24, 0
      %p177 = por %p175, %p176
      %s178 = ssub.s32 %s18, %s25
      %p179 = scmp.eq.s32.totalorder %s178, 0
      %s181 = sadd.s32 %s180, 1
      %s182 = scalar_select %p179, %s180, %s181
      %p185 = pneg %p179
      %p186 = scmp.eq.s32.totalorder %s18, 1
      %p187 = por %p185, %p186
      %p188 = scmp.ne.s32.totalorder %s180, %s183
      %p189 = scmp.eq.s32.totalorder %s18, 0
      %p190 = por %p188, %p189
      %p191 = scmp.ne.s32.totalorder %s180, %s183
      %p192 = scmp.eq.s32.totalorder %s23, 1
      %p193 = por %p191, %p192
      %p194 = scmp.ne.s32.totalorder %s183, %s184
      %p195 = scmp.eq.s32.totalorder %s23, 0
      %p196 = por %p194, %p195
      %p197 = scmp.ne.s32.totalorder %s183, %s184
      %p198 = scmp.eq.s32.totalorder %s24, 1
      %p199 = por %p197, %p198
      %p201 = scmp.ne.s32.totalorder %s184, %s200
      %p202 = scmp.eq.s32.totalorder %s24, 0
      %p203 = por %p201, %p202
      %p204 = scmp.le.s32.totalorder 1, %s18
      %p205 = scmp.lt.s32.totalorder %s18, 3
      %p206 = pnand %p204, %p205
      %p207 = pneg %p206
      // Predicated region
      $region9: #{tpu_custom_call.1} parent=5 // pred_check
        _
      $region10: #{tpu_custom_call.1} parent=5 // pred_check_branch
        %209 = sbr.rel (%p206) target = $region12
      $region11: #{tpu_custom_call.1} parent=5 // pred_region
        %s210 = ssub.s32 %s18, 1
        // Predicated region
        $region13: #{tpu_custom_call.1} parent=11 // pred_check
          %p211 = pneg %p65
        $region14: #{tpu_custom_call.1} parent=11 // pred_check_branch
          %213 = sbr.rel (%p211) target = $region16
        $region15: #{tpu_custom_call.1} parent=11 // pred_region
          _
        $region16: #{tpu_custom_call.1} parent=11 // pred_fallthru
          _
        // Predicated region
        $region17: #{tpu_custom_call.1} parent=11 // pred_check
          %p214 = pneg %p86
        $region18: #{tpu_custom_call.1} parent=11 // pred_check_branch
          %216 = sbr.rel (%p214) target = $region20
        $region19: #{tpu_custom_call.1} parent=11 // pred_region
          _
        $region20: #{tpu_custom_call.1} parent=11 // pred_fallthru
          _
        // Predicated region
        $region21: #{tpu_custom_call.1} parent=11 // pred_check
          %p217 = pneg %p107
        $region22: #{tpu_custom_call.1} parent=11 // pred_check_branch
          %219 = sbr.rel (%p217) target = $region24
        $region23: #{tpu_custom_call.1} parent=11 // pred_region
          %s221 = ssub.s32 2048, 2048
          %222 = vsyncadd [#allocation3], %s221
          %s223 = sshll.u32 [#allocation2], 4
          %s224 = int_to_ptr.vmem [resolvable:$true] %s223
          %229 = dma.hbm_to_vmem [thread:$0]  %s3, 2048, %s224, [#allocation3], 128, 128, 8
        $region24: #{tpu_custom_call.1} parent=11 // pred_fallthru
          _
        // Predicated region
        $region25: #{tpu_custom_call.1} parent=11 // pred_check
          %p230 = pneg %p128
        $region26: #{tpu_custom_call.1} parent=11 // pred_check_branch
          %232 = sbr.rel (%p230) target = $region28
        $region27: #{tpu_custom_call.1} parent=11 // pred_region
          _
        $region28: #{tpu_custom_call.1} parent=11 // pred_fallthru
          _
        // Predicated region
        $region29: #{tpu_custom_call.1} parent=11 // pred_check
          %p233 = pneg %p149
        $region30: #{tpu_custom_call.1} parent=11 // pred_check_branch
          %235 = sbr.rel (%p233) target = $region32
        $region31: #{tpu_custom_call.1} parent=11 // pred_region
          %s237 = ssub.s32 2048, 2048
          %238 = vsyncadd [#allocation6], %s237
          %s239 = sshll.u32 [#allocation5], 4
          %s240 = int_to_ptr.vmem [resolvable:$true] %s239
          %245 = dma.hbm_to_vmem [thread:$0]  %s5, 2048, %s240, [#allocation6], 128, 128, 8
        $region32: #{tpu_custom_call.1} parent=11 // pred_fallthru
          _
        // Predicated region
        $region33: #{tpu_custom_call.1} parent=11 // pred_check
          %p246 = pneg %p170
        $region34: #{tpu_custom_call.1} parent=11 // pred_check_branch
          %248 = sbr.rel (%p246) target = $region36
        $region35: #{tpu_custom_call.1} parent=11 // pred_region
          _
        $region36: #{tpu_custom_call.1} parent=11 // pred_fallthru
          _
      $region12: #{tpu_custom_call.1} parent=5 // pred_fallthru
        _
      %p249 = scmp.lt.s32.totalorder %s18, 2
      // Predicated region
      $region37: #{tpu_custom_call.1} parent=5 // pred_check
        %p250 = pneg %p249
      $region38: #{tpu_custom_call.1} parent=5 // pred_check_branch
        %252 = sbr.rel (%p250) target = $region40
      $region39: #{tpu_custom_call.1} parent=5 // pred_region
        // Predicated region
        $region41: #{tpu_custom_call.1} parent=39 // pred_check
          %p253 = pneg %p38
        $region42: #{tpu_custom_call.1} parent=39 // pred_check_branch
          %255 = sbr.rel (%p253) target = $region44
        $region43: #{tpu_custom_call.1} parent=39 // pred_region
          %s256 = smul.u32 4, %s18
          %p257 = scmp.lt.s32.totalorder %s256, 7
          %s258 = scalar_select %p257, %s256, 7
          %s259 = smul.addr %s258, 8
          %s260 = scalar_lea.vmem %s0, %s259
          %s261 = smul.u32 4, %s18
        $region44: #{tpu_custom_call.1} parent=39 // pred_fallthru
          _
      $region40: #{tpu_custom_call.1} parent=5 // pred_fallthru
        _
      %p262 = scmp.le.s32.totalorder 1, %s18
      %p263 = scmp.lt.s32.totalorder %s18, 3
      %p264 = pnand %p262, %p263
      %p265 = pneg %p264
      // Predicated region
      $region45: #{tpu_custom_call.1} parent=5 // pred_check
        _
      $region46: #{tpu_custom_call.1} parent=5 // pred_check_branch
        %267 = sbr.rel (%p264) target = $region48
      $region47: #{tpu_custom_call.1} parent=5 // pred_region
        %s268 = ssub.s32 %s18, 1
        // Predicated region
        $region49: #{tpu_custom_call.1} parent=47 // pred_check
          %p269 = pneg %p107
        $region50: #{tpu_custom_call.1} parent=47 // pred_check_branch
          %271 = sbr.rel (%p269) target = $region52
        $region51: #{tpu_custom_call.1} parent=47 // pred_region
          %272 = dma.done [#allocation3], 2048
        $region52: #{tpu_custom_call.1} parent=47 // pred_fallthru
          _
        // Predicated region
        $region53: #{tpu_custom_call.1} parent=47 // pred_check
          %p273 = pneg %p149
        $region54: #{tpu_custom_call.1} parent=47 // pred_check_branch
          %275 = sbr.rel (%p273) target = $region56
        $region55: #{tpu_custom_call.1} parent=47 // pred_region
          %276 = dma.done [#allocation6], 2048
        $region56: #{tpu_custom_call.1} parent=47 // pred_fallthru
          _
        %s277 = smul.u32 4, %s23
        %p278 = scmp.lt.s32.totalorder %s277, 7
        %s279 = scalar_select %p278, %s277, 7
        %s280 = smul.addr %s279, 8
        %s281 = scalar_lea.vmem %s0, %s280
        %p282 = pneg %p44
        %p283 = pneg %p41
        %p284 = pneg %p65
        %p285 = pneg %p62
        %p286 = pneg %p86
        %p287 = pneg %p83
        %p288 = pneg %p107
        %p289 = pneg %p104
        %p290 = pneg %p128
        %p291 = pneg %p125
        %p292 = pneg %p149
        %p293 = pneg %p146
        %p294 = pneg %p170
        %p295 = pneg %p167
        %p296 = pneg %p196
        %p297 = pneg %p193
        %s298 = sand.u32 %s183, 1
        %s299 = scalar_lea.sflag [#allocation4], %s298
        %s300 = sand.u32 %s183, 1
        %s301 = smul.addr %s300, 32
        %s302 = scalar_lea.vmem [#allocation7], %s301
        %s303 = smul.u32 4, %s23
        %p304 = scmp.lt.s32.totalorder %s303, 7
        %s305 = scalar_select %p304, %s303, 7
        %s306 = smul.addr %s305, 8
        %s307 = scalar_lea.vmem %s0, %s306
        %s308 = smul.u32 4, %s23
        %s309 = smul.u32 4, %s23
        %v310 = vld [vmem:[%s307] sm:$0xff]
        %v311 = vld [vmem:[%s307 + $0x8] sm:$0xff]
        %v312 = vld [vmem:[%s307 + $0x10] sm:$0xff]
        %v313 = vld [vmem:[%s307 + $0x18] sm:$0xff]
        %v314 = vld [vmem:[%s1] sm:$0xff]
        %v315 = vld [vmem:[%s2] sm:$0x1]
        %v317 = vlaneseq
        %v318 = vshrl.u32 %v317, 7
        %v319 = vsub.s32 0, %v318
        %v320 = vrot.slane %v315, %v319
        %vm322 = vcmask 64512
        %v324 = vsel %vm322, %v310, 0
        %v327 = vsel %vm322, %v311, 0
        %v330 = vsel %vm322, %v312, 0
        %v333 = vsel %vm322, %v313, 0
        %335 = vmatprep.subr.mxu0 0.0
        %336 = vmatpush1.msra.mxu0 %v314
        %337 = vmatprep.subr.mxu0 0.0
        %338 = vmatpush1.msra.mxu0 0.0
        %339 = vmatprep.subr.mxu0 0.0
        %340 = vmatpush1.msra.mxu0 0.0
        %341 = vmatprep.subr.mxu0 0.0
        %342 = vmatpush1.msra.mxu0 0.0
        %343 = vmatprep.subr.mxu0 0.0
        %344 = vmatpush1.msra.mxu0 0.0
        %345 = vmatprep.subr.mxu0 0.0
        %346 = vmatpush1.msra.mxu0 0.0
        %347 = vmatprep.subr.mxu0 0.0
        %348 = vmatpush1.msra.mxu0 0.0
        %349 = vmatprep.subr.mxu0 0.0
        %350 = vmatpush1.msra.mxu0 0.0
        %351 = vmatprep.subr.mxu0 0.0
        %352 = vmatpush1.msra.mxu0 0.0
        %353 = vmatprep.subr.mxu0 0.0
        %354 = vmatpush1.msra.mxu0 0.0
        %355 = vmatprep.subr.mxu0 0.0
        %356 = vmatpush1.msra.mxu0 0.0
        %357 = vmatprep.subr.mxu0 0.0
        %358 = vmatpush1.msra.mxu0 0.0
        %359 = vmatprep.subr.mxu0 0.0
        %360 = vmatpush1.msra.mxu0 0.0
        %361 = vmatprep.subr.mxu0 0.0
        %362 = vmatpush1.msra.mxu0 0.0
        %363 = vmatprep.subr.mxu0 0.0
        %364 = vmatpush1.msra.mxu0 0.0
        %365 = vmatprep.subr.mxu0 0.0
        %366 = vmatpush1.msra.mxu0 0.0
        %367 = vmatprep.subr.mxu0 0.0
        %368 = vmatpush1.msra.mxu0 0.0
        %369 = vmatprep.subr.mxu0 0.0
        %370 = vmatpush1.msra.mxu0 0.0
        %371 = vmatprep.subr.mxu0 0.0
        %372 = vmatpush1.msra.mxu0 0.0
        %373 = vmatprep.subr.mxu0 0.0
        %374 = vmatpush1.msra.mxu0 0.0
        %375 = vmatprep.subr.mxu0 0.0
        %376 = vmatpush1.msra.mxu0 0.0
        %377 = vmatprep.subr.mxu0 0.0
        %378 = vmatpush1.msra.mxu0 0.0
        %379 = vmatprep.subr.mxu0 0.0
        %380 = vmatpush1.msra.mxu0 0.0
        %381 = vmatprep.subr.mxu0 0.0
        %382 = vmatpush1.msra.mxu0 0.0
        %383 = vmatprep.subr.mxu0 0.0
        %384 = vmatpush1.msra.mxu0 0.0
        %385 = vmatprep.subr.mxu0 0.0
        %386 = vmatpush1.msra.mxu0 0.0
        %387 = vmatprep.subr.mxu0 0.0
        %388 = vmatpush1.msra.mxu0 0.0
        %389 = vmatprep.subr.mxu0 0.0
        %390 = vmatpush1.msra.mxu0 0.0
        %391 = vmatprep.subr.mxu0 0.0
        %392 = vmatpush1.msra.mxu0 0.0
        %393 = vmatprep.subr.mxu0 0.0
        %394 = vmatpush1.msra.mxu0 0.0
        %395 = vmatprep.subr.mxu0 0.0
        %396 = vmatpush1.msra.mxu0 0.0
        %397 = vmatprep.subr.mxu0 0.0
        %398 = vmatpush1.msra.mxu0 0.0
        %399 = vmatprep.mubr.f32.mxu0 0.0
        %400 = vmatmul.mubr.f32.gmra.mrb[0].mxu0 %v324
        %v401 = vpop.f32.mrb[0].mxu0
        %v402 = vadd.f32 %v320, %v401
        %v403 = vpop.f32.mrb[0].mxu0
        %404 = vmatprep.mubr.f32.mxu0 0.0
        %405 = vmatmul.mubr.f32.gmra.mrb[0].mxu0 %v327
        %v406 = vpop.f32.mrb[0].mxu0
        %v407 = vadd.f32 %v320, %v406
        %v408 = vpop.f32.mrb[0].mxu0
        %409 = vmatprep.mubr.f32.mxu0 0.0
        %410 = vmatmul.mubr.f32.gmra.mrb[0].mxu0 %v330
        %v411 = vpop.f32.mrb[0].mxu0
        %v412 = vadd.f32 %v320, %v411
        %v413 = vpop.f32.mrb[0].mxu0
        %414 = vmatprep.mubr.f32.mxu0 0.0
        %415 = vmatmul.mubr.f32.gmra.mrb[0].mxu0 %v333
        %v416 = vpop.f32.mrb[0].mxu0
        %v417 = vadd.f32 %v320, %v416
        %v418 = vpop.f32.mrb[0].mxu0
        %419 = vdwg.mxu0
        %v420 = vmul.f32 %v402, 0.01
        %v421 = vmul.f32 %v407, 0.01
        %v422 = vmul.f32 %v412, 0.01
        %v423 = vmul.f32 %v417, 0.01
        %v424 = vmax.f32 %v402, %v420
        %v425 = vmax.f32 %v407, %v421
        %v426 = vmax.f32 %v412, %v422
        %v427 = vmax.f32 %v417, %v423
        %v428 = vld [vmem:[#allocation2] sm:$0xff]
        %v429 = vld [vmem:[#allocation2 + $0x8] sm:$0xff]
        %v430 = vld [vmem:[#allocation2 + $0x10] sm:$0xff]
        %v431 = vld [vmem:[#allocation2 + $0x18] sm:$0xff]
        %v432 = vld [vmem:[#allocation2 + $0x20] sm:$0xff]
        %v433 = vld [vmem:[#allocation2 + $0x28] sm:$0xff]
        %v434 = vld [vmem:[#allocation2 + $0x30] sm:$0xff]
        %v435 = vld [vmem:[#allocation2 + $0x38] sm:$0xff]
        %v436 = vld [vmem:[#allocation2 + $0x40] sm:$0xff]
        %v437 = vld [vmem:[#allocation2 + $0x48] sm:$0xff]
        %v438 = vld [vmem:[#allocation2 + $0x50] sm:$0xff]
        %v439 = vld [vmem:[#allocation2 + $0x58] sm:$0xff]
        %v440 = vld [vmem:[#allocation2 + $0x60] sm:$0xff]
        %v441 = vld [vmem:[#allocation2 + $0x68] sm:$0xff]
        %v442 = vld [vmem:[#allocation2 + $0x70] sm:$0xff]
        %v443 = vld [vmem:[#allocation2 + $0x78] sm:$0xff]
        %v444 = vld [vmem:[%s4] sm:$0x1]
        %v446 = vlaneseq
        %v447 = vshrl.u32 %v446, 7
        %v448 = vsub.s32 0, %v447
        %v449 = vrot.slane %v444, %v448
        %451 = vmatprep.subr.mxu0 0.0
        %452 = vmatpush1.msra.mxu0 %v428
        %453 = vmatprep.subr.mxu0 0.0
        %454 = vmatpush1.msra.mxu0 %v429
        %455 = vmatprep.subr.mxu0 0.0
        %456 = vmatpush1.msra.mxu0 %v430
        %457 = vmatprep.subr.mxu0 0.0
        %458 = vmatpush1.msra.mxu0 %v431
        %459 = vmatprep.subr.mxu0 0.0
        %460 = vmatpush1.msra.mxu0 %v432
        %461 = vmatprep.subr.mxu0 0.0
        %462 = vmatpush1.msra.mxu0 %v433
        %463 = vmatprep.subr.mxu0 0.0
        %464 = vmatpush1.msra.mxu0 %v434
        %465 = vmatprep.subr.mxu0 0.0
        %466 = vmatpush1.msra.mxu0 %v435
        %467 = vmatprep.subr.mxu0 0.0
        %468 = vmatpush1.msra.mxu0 %v436
        %469 = vmatprep.subr.mxu0 0.0
        %470 = vmatpush1.msra.mxu0 %v437
        %471 = vmatprep.subr.mxu0 0.0
        %472 = vmatpush1.msra.mxu0 %v438
        %473 = vmatprep.subr.mxu0 0.0
        %474 = vmatpush1.msra.mxu0 %v439
        %475 = vmatprep.subr.mxu0 0.0
        %476 = vmatpush1.msra.mxu0 %v440
        %477 = vmatprep.subr.mxu0 0.0
        %478 = vmatpush1.msra.mxu0 %v441
        %479 = vmatprep.subr.mxu0 0.0
        %480 = vmatpush1.msra.mxu0 %v442
        %481 = vmatprep.subr.mxu0 0.0
        %482 = vmatpush1.msra.mxu0 %v443
        %483 = vmatprep.subr.mxu0 0.0
        %484 = vmatpush1.msra.mxu0 0.0
        %485 = vmatprep.subr.mxu0 0.0
        %486 = vmatpush1.msra.mxu0 0.0
        %487 = vmatprep.subr.mxu0 0.0
        %488 = vmatpush1.msra.mxu0 0.0
        %489 = vmatprep.subr.mxu0 0.0
        %490 = vmatpush1.msra.mxu0 0.0
        %491 = vmatprep.subr.mxu0 0.0
        %492 = vmatpush1.msra.mxu0 0.0
        %493 = vmatprep.subr.mxu0 0.0
        %494 = vmatpush1.msra.mxu0 0.0
        %495 = vmatprep.subr.mxu0 0.0
        %496 = vmatpush1.msra.mxu0 0.0
        %497 = vmatprep.subr.mxu0 0.0
        %498 = vmatpush1.msra.mxu0 0.0
        %499 = vmatprep.subr.mxu0 0.0
        %500 = vmatpush1.msra.mxu0 0.0
        %501 = vmatprep.subr.mxu0 0.0
        %502 = vmatpush1.msra.mxu0 0.0
        %503 = vmatprep.subr.mxu0 0.0
        %504 = vmatpush1.msra.mxu0 0.0
        %505 = vmatprep.subr.mxu0 0.0
        %506 = vmatpush1.msra.mxu0 0.0
        %507 = vmatprep.subr.mxu0 0.0
        %508 = vmatpush1.msra.mxu0 0.0
        %509 = vmatprep.subr.mxu0 0.0
        %510 = vmatpush1.msra.mxu0 0.0
        %511 = vmatprep.subr.mxu0 0.0
        %512 = vmatpush1.msra.mxu0 0.0
        %513 = vmatprep.subr.mxu0 0.0
        %514 = vmatpush1.msra.mxu0 0.0
        %515 = vmatprep.mubr.f32.mxu0 0.0
        %516 = vmatmul.mubr.f32.gmra.mrb[0].mxu0 %v424
        %v517 = vpop.f32.mrb[0].mxu0
        %v518 = vadd.f32 %v449, %v517
        %v519 = vpop.f32.mrb[0].mxu0
        %520 = vmatprep.mubr.f32.mxu0 0.0
        %521 = vmatmul.mubr.f32.gmra.mrb[0].mxu0 %v425
        %v522 = vpop.f32.mrb[0].mxu0
        %v523 = vadd.f32 %v449, %v522
        %v524 = vpop.f32.mrb[0].mxu0
        %525 = vmatprep.mubr.f32.mxu0 0.0
        %526 = vmatmul.mubr.f32.gmra.mrb[0].mxu0 %v426
        %v527 = vpop.f32.mrb[0].mxu0
        %v528 = vadd.f32 %v449, %v527
        %v529 = vpop.f32.mrb[0].mxu0
        %530 = vmatprep.mubr.f32.mxu0 0.0
        %531 = vmatmul.mubr.f32.gmra.mrb[0].mxu0 %v427
        %v532 = vpop.f32.mrb[0].mxu0
        %v533 = vadd.f32 %v449, %v532
        %v534 = vpop.f32.mrb[0].mxu0
        %535 = vdwg.mxu0
        %v536 = vmul.f32 %v518, 0.01
        %v537 = vmul.f32 %v523, 0.01
        %v538 = vmul.f32 %v528, 0.01
        %v539 = vmul.f32 %v533, 0.01
        %v540 = vmax.f32 %v518, %v536
        %v541 = vmax.f32 %v523, %v537
        %v542 = vmax.f32 %v528, %v538
        %v543 = vmax.f32 %v533, %v539
        %v544 = vld [vmem:[#allocation5] sm:$0xff]
        %v545 = vld [vmem:[#allocation5 + $0x8] sm:$0xff]
        %v546 = vld [vmem:[#allocation5 + $0x10] sm:$0xff]
        %v547 = vld [vmem:[#allocation5 + $0x18] sm:$0xff]
        %v548 = vld [vmem:[#allocation5 + $0x20] sm:$0xff]
        %v549 = vld [vmem:[#allocation5 + $0x28] sm:$0xff]
        %v550 = vld [vmem:[#allocation5 + $0x30] sm:$0xff]
        %v551 = vld [vmem:[#allocation5 + $0x38] sm:$0xff]
        %v552 = vld [vmem:[#allocation5 + $0x40] sm:$0xff]
        %v553 = vld [vmem:[#allocation5 + $0x48] sm:$0xff]
        %v554 = vld [vmem:[#allocation5 + $0x50] sm:$0xff]
        %v555 = vld [vmem:[#allocation5 + $0x58] sm:$0xff]
        %v556 = vld [vmem:[#allocation5 + $0x60] sm:$0xff]
        %v557 = vld [vmem:[#allocation5 + $0x68] sm:$0xff]
        %v558 = vld [vmem:[#allocation5 + $0x70] sm:$0xff]
        %v559 = vld [vmem:[#allocation5 + $0x78] sm:$0xff]
        %v560 = vld [vmem:[%s6] sm:$0x1]
        %v562 = vlaneseq
        %v563 = vshrl.u32 %v562, 7
        %v564 = vsub.s32 0, %v563
        %v565 = vrot.slane %v560, %v564
        %567 = vmatprep.subr.mxu0 0.0
        %568 = vmatpush1.msra.mxu0 %v544
        %569 = vmatprep.subr.mxu0 0.0
        %570 = vmatpush1.msra.mxu0 %v545
        %571 = vmatprep.subr.mxu0 0.0
        %572 = vmatpush1.msra.mxu0 %v546
        %573 = vmatprep.subr.mxu0 0.0
        %574 = vmatpush1.msra.mxu0 %v547
        %575 = vmatprep.subr.mxu0 0.0
        %576 = vmatpush1.msra.mxu0 %v548
        %577 = vmatprep.subr.mxu0 0.0
        %578 = vmatpush1.msra.mxu0 %v549
        %579 = vmatprep.subr.mxu0 0.0
        %580 = vmatpush1.msra.mxu0 %v550
        %581 = vmatprep.subr.mxu0 0.0
        %582 = vmatpush1.msra.mxu0 %v551
        %583 = vmatprep.subr.mxu0 0.0
        %584 = vmatpush1.msra.mxu0 %v552
        %585 = vmatprep.subr.mxu0 0.0
        %586 = vmatpush1.msra.mxu0 %v553
        %587 = vmatprep.subr.mxu0 0.0
        %588 = vmatpush1.msra.mxu0 %v554
        %589 = vmatprep.subr.mxu0 0.0
        %590 = vmatpush1.msra.mxu0 %v555
        %591 = vmatprep.subr.mxu0 0.0
        %592 = vmatpush1.msra.mxu0 %v556
        %593 = vmatprep.subr.mxu0 0.0
        %594 = vmatpush1.msra.mxu0 %v557
        %595 = vmatprep.subr.mxu0 0.0
        %596 = vmatpush1.msra.mxu0 %v558
        %597 = vmatprep.subr.mxu0 0.0
        %598 = vmatpush1.msra.mxu0 %v559
        %599 = vmatprep.subr.mxu0 0.0
        %600 = vmatpush1.msra.mxu0 0.0
        %601 = vmatprep.subr.mxu0 0.0
        %602 = vmatpush1.msra.mxu0 0.0
        %603 = vmatprep.subr.mxu0 0.0
        %604 = vmatpush1.msra.mxu0 0.0
        %605 = vmatprep.subr.mxu0 0.0
        %606 = vmatpush1.msra.mxu0 0.0
        %607 = vmatprep.subr.mxu0 0.0
        %608 = vmatpush1.msra.mxu0 0.0
        %609 = vmatprep.subr.mxu0 0.0
        %610 = vmatpush1.msra.mxu0 0.0
        %611 = vmatprep.subr.mxu0 0.0
        %612 = vmatpush1.msra.mxu0 0.0
        %613 = vmatprep.subr.mxu0 0.0
        %614 = vmatpush1.msra.mxu0 0.0
        %615 = vmatprep.subr.mxu0 0.0
        %616 = vmatpush1.msra.mxu0 0.0
        %617 = vmatprep.subr.mxu0 0.0
        %618 = vmatpush1.msra.mxu0 0.0
        %619 = vmatprep.subr.mxu0 0.0
        %620 = vmatpush1.msra.mxu0 0.0
        %621 = vmatprep.subr.mxu0 0.0
        %622 = vmatpush1.msra.mxu0 0.0
        %623 = vmatprep.subr.mxu0 0.0
        %624 = vmatpush1.msra.mxu0 0.0
        %625 = vmatprep.subr.mxu0 0.0
        %626 = vmatpush1.msra.mxu0 0.0
        %627 = vmatprep.subr.mxu0 0.0
        %628 = vmatpush1.msra.mxu0 0.0
        %629 = vmatprep.subr.mxu0 0.0
        %630 = vmatpush1.msra.mxu0 0.0
        %631 = vmatprep.mubr.f32.mxu0 0.0
        %632 = vmatmul.mubr.f32.gmra.mrb[0].mxu0 %v540
        %v633 = vpop.f32.mrb[0].mxu0
        %v634 = vadd.f32 %v565, %v633
        %v635 = vpop.f32.mrb[0].mxu0
        %636 = vmatprep.mubr.f32.mxu0 0.0
        %637 = vmatmul.mubr.f32.gmra.mrb[0].mxu0 %v541
        %v638 = vpop.f32.mrb[0].mxu0
        %v639 = vadd.f32 %v565, %v638
        %v640 = vpop.f32.mrb[0].mxu0
        %641 = vmatprep.mubr.f32.mxu0 0.0
        %642 = vmatmul.mubr.f32.gmra.mrb[0].mxu0 %v542
        %v643 = vpop.f32.mrb[0].mxu0
        %v644 = vadd.f32 %v565, %v643
        %v645 = vpop.f32.mrb[0].mxu0
        %646 = vmatprep.mubr.f32.mxu0 0.0
        %647 = vmatmul.mubr.f32.gmra.mrb[0].mxu0 %v543
        %v648 = vpop.f32.mrb[0].mxu0
        %v649 = vadd.f32 %v565, %v648
        %v650 = vpop.f32.mrb[0].mxu0
        %651 = vdwg.mxu0
        %652 = vst [vmem:[%s302] sm:$0xff] %v634
        %653 = vst [vmem:[%s302 + $0x8] sm:$0xff] %v639
        %654 = vst [vmem:[%s302 + $0x10] sm:$0xff] %v644
        %655 = vst [vmem:[%s302 + $0x18] sm:$0xff] %v649
        %s656 = sand.u32 %s183, 1
        %s657 = scalar_lea.sflag [#allocation4], %s656
        %s658 = sand.u32 %s183, 1
        %s659 = smul.addr %s658, 32
        %s660 = scalar_lea.vmem [#allocation7], %s659
        // Predicated region
        $region57: #{tpu_custom_call.1} parent=47 // pred_check
          %p661 = pneg %p193
        $region58: #{tpu_custom_call.1} parent=47 // pred_check_branch
          %663 = sbr.rel (%p661) target = $region60
        $region59: #{tpu_custom_call.1} parent=47 // pred_region
          %s664 = smul.u32 4, %s23
          %s666 = ssub.s32 512, 512
          %667 = vsyncadd %s657, %s666
          %s668 = smul.addr %s664, 128
          %s669 = scalar_lea.hbm %s7, %s668
          %s670 = sshll.u32 %s660, 4
          %s671 = int_to_ptr.vmem [resolvable:$true] %s670
          %676 = dma.vmem_to_hbm [thread:$0]  %s671, 512, %s669, %s657, 128, 128, 8
        $region60: #{tpu_custom_call.1} parent=47 // pred_fallthru
          _
      $region48: #{tpu_custom_call.1} parent=5 // pred_fallthru
        _
      %p677 = scmp.le.s32.totalorder 2, %s18
      // Predicated region
      $region61: #{tpu_custom_call.1} parent=5 // pred_check
        %p678 = pneg %p677
      $region62: #{tpu_custom_call.1} parent=5 // pred_check_branch
        %680 = sbr.rel (%p678) target = $region64
      $region63: #{tpu_custom_call.1} parent=5 // pred_region
        %s681 = ssub.s32 %s18, 2
        // Predicated region
        $region65: #{tpu_custom_call.1} parent=63 // pred_check
          %p682 = pneg %p199
        $region66: #{tpu_custom_call.1} parent=63 // pred_check_branch
          %684 = sbr.rel (%p682) target = $region68
        $region67: #{tpu_custom_call.1} parent=63 // pred_region
          %s685 = sand.u32 %s184, 1
          %s686 = scalar_lea.sflag [#allocation4], %s685
          %s687 = sand.u32 %s184, 1
          %s688 = smul.addr %s687, 32
          %s689 = scalar_lea.vmem [#allocation7], %s688
          %690 = dma.done %s686, 512
        $region68: #{tpu_custom_call.1} parent=63 // pred_fallthru
          _
      $region64: #{tpu_custom_call.1} parent=5 // pred_fallthru
        _
    $region6: #{tpu_custom_call.1} parent=1 // loop_footer
      %s22 = sadd.s32 1, %s18
    $region7: #{tpu_custom_call.1} parent=1 // loop_footer_branch
      %17 = sbr.rel target = $region3
    $region8: #{tpu_custom_call.1} parent=1 // loop_exit
      _
    %691 = vsyncpa [#allocation3], 1
    %s692 = scalar_lea.sflag [#allocation3], 1
    %693 = vsyncpa %s692, 1
    %694 = vsyncpa [#allocation6], 1
    %695 = vsyncpa [#allocation4], 1
    %s696 = scalar_lea.sflag [#allocation4], 1
    %697 = vsyncpa %s696, 1

// kernel: tpu_custom_call.1
$region0: #{tpu_custom_call.1}
  #allocation0 [shape = 'u32[]', space=smem, size = 0x4, offset = 0x4, fixed_abs, tag = 'smem constant byte address 0x4 - core index']
  #allocation1 [shape = 'u32[144,128]{1,0:T(1,128)}', space=vmem, size = 0x12000, scoped, tag = 'internal scratch']
  %s0 = inlined_call_operand.vmem [shape: f32[64,8], index: 0, kind: input, shape index: {}]
  %s1 = inlined_call_operand.vmem [shape: f32[8,128], index: 1, kind: input, shape index: {}]
  %s2 = inlined_call_operand.vmem [shape: f32[1,128], index: 2, kind: input, shape index: {}]
  %s3 = inlined_call_operand.hbm [shape: f32[128,128], index: 3, kind: input, shape index: {}]
  %s4 = inlined_call_operand.vmem [shape: f32[1,128], index: 4, kind: input, shape index: {}]
  %s5 = inlined_call_operand.hbm [shape: f32[128,128], index: 5, kind: input, shape index: {}]
  %s6 = inlined_call_operand.vmem [shape: f32[1,128], index: 6, kind: input, shape index: {}]
  %s7 = inlined_call_operand.hbm [shape: f32[64,128], index: 7, kind: output, shape index: {}]
  %s8 = sld [smem:[#allocation0]]
  $region69: #{tpu_custom_call.1} parent=0
    _
  %s10 = ssub.s32 1, %s8
  %s11 = scalar_select 0, %s10, %s8
  $region1: #{tpu_custom_call.1} parent=0
    #allocation2 [shape = 'u8[65536]{0}', space=vmem, size = 0x10000, scoped, tag = 'input window, operand 3, single buffered']
    #allocation3 [shape = 's32[2]{0}', space=sflag, size = 0x8, scoped, tag = 'scoped memory for tpu_custom_call.1']
    #allocation4 [shape = 's32[2]{0}', space=sflag, size = 0x8, scoped, tag = 'scoped memory for tpu_custom_call.1']
    #allocation5 [shape = 'u8[65536]{0}', space=vmem, size = 0x10000, scoped, tag = 'input window, operand 5, single buffered']
    #allocation6 [shape = 's32[1]{0}', space=sflag, size = 0x4, scoped, tag = 'scoped memory for tpu_custom_call.1']
    #allocation7 [shape = 'u8[32768]{0}', space=vmem, size = 0x8000, scoped, tag = 'output window, operand 0']
    %12 = vsyncpa [#allocation3], 0
    %13 = vsyncpa [#allocation6], 0
    %14 = vsyncpa [#allocation4], 0
    %s15 = scalar_lea.sflag [#allocation4], 1
    %16 = vsyncpa %s15, 0
    loop: start=0, step=1, limit=4
    $region2: #{tpu_custom_call.1} parent=1 // loop_pre_header
      _
    $region3: #{tpu_custom_call.1} parent=1 // loop_header
      %s18 = sphi 0, %s22
      %p19 = scmp.ge.s32.totalorder %s18, 4
      %s28 = sphi 0, %s30
      %s31 = sphi 0, %s28
      %s32 = sphi 0, %s31
      %s48 = sphi 0, %s32
      %s52 = sphi 0, %s52
      %s54 = sphi 0, %s52
      %s55 = sphi 0, %s54
      %s69 = sphi 0, %s55
      %s73 = sphi 0, %s73
      %s75 = sphi 0, %s73
      %s76 = sphi 0, %s75
      %s90 = sphi 0, %s76
      %s94 = sphi 0, %s94
      %s96 = sphi 0, %s94
      %s97 = sphi 0, %s96
      %s111 = sphi 0, %s97
      %s115 = sphi 0, %s115
      %s117 = sphi 0, %s115
      %s118 = sphi 0, %s117
      %s132 = sphi 0, %s118
      %s136 = sphi 0, %s136
      %s138 = sphi 0, %s136
      %s139 = sphi 0, %s138
      %s153 = sphi 0, %s139
      %s157 = sphi 0, %s157
      %s159 = sphi 0, %s157
      %s160 = sphi 0, %s159
      %s174 = sphi 0, %s160
      %s180 = sphi 0, %s182
      %s183 = sphi 0, %s180
      %s184 = sphi 0, %s183
      %s200 = sphi 0, %s184
    $region4: #{tpu_custom_call.1} parent=1 // loop_header_branch
      %21 = sbr.rel (%p19) target = $region8
    $region5: #{tpu_custom_call.1} parent=1 // loop_body
      %s23 = ssub.s32 %s18, 1
      %s24 = ssub.s32 %s18, 2
      %s25 = sadd.s32 %s18, 1
      %s26 = ssub.s32 %s18, %s25
      %p27 = scmp.eq.s32.totalorder %s26, 0
      %s29 = sadd.s32 %s28, 1
      %s30 = scalar_select %p27, %s28, %s29
      %p33 = pneg %p27
      %p34 = scmp.eq.s32.totalorder %s18, 1
      %p35 = por %p33, %p34
      %p36 = scmp.ne.s32.totalorder %s28, %s31
      %p37 = scmp.eq.s32.totalorder %s18, 0
      %p38 = por %p36, %p37
      %p39 = scmp.ne.s32.totalorder %s28, %s31
      %p40 = scmp.eq.s32.totalorder %s23, 1
      %p41 = por %p39, %p40
      %p42 = scmp.ne.s32.totalorder %s31, %s32
      %p43 = scmp.eq.s32.totalorder %s23, 0
      %p44 = por %p42, %p43
      %p45 = scmp.ne.s32.totalorder %s31, %s32
      %p46 = scmp.eq.s32.totalorder %s24, 1
      %p47 = por %p45, %p46
      %p49 = scmp.ne.s32.totalorder %s32, %s48
      %p50 = scmp.eq.s32.totalorder %s24, 0
      %p51 = por %p49, %p50
      %s53 = sadd.s32 %s52, 1
      %p56 = scmp.eq.s32.totalorder %s18, 1
      %p57 = scmp.ne.s32.totalorder %s52, %s54
      %p58 = scmp.eq.s32.totalorder %s18, 0
      %p59 = por %p57, %p58
      %p60 = scmp.ne.s32.totalorder %s52, %s54
      %p61 = scmp.eq.s32.totalorder %s23, 1
      %p62 = por %p60, %p61
      %p63 = scmp.ne.s32.totalorder %s54, %s55
      %p64 = scmp.eq.s32.totalorder %s23, 0
      %p65 = por %p63, %p64
      %p66 = scmp.ne.s32.totalorder %s54, %s55
      %p67 = scmp.eq.s32.totalorder %s24, 1
      %p68 = por %p66, %p67
      %p70 = scmp.ne.s32.totalorder %s55, %s69
      %p71 = scmp.eq.s32.totalorder %s24, 0
      %p72 = por %p70, %p71
      %s74 = sadd.s32 %s73, 1
      %p77 = scmp.eq.s32.totalorder %s18, 1
      %p78 = scmp.ne.s32.totalorder %s73, %s75
      %p79 = scmp.eq.s32.totalorder %s18, 0
      %p80 = por %p78, %p79
      %p81 = scmp.ne.s32.totalorder %s73, %s75
      %p82 = scmp.eq.s32.totalorder %s23, 1
      %p83 = por %p81, %p82
      %p84 = scmp.ne.s32.totalorder %s75, %s76
      %p85 = scmp.eq.s32.totalorder %s23, 0
      %p86 = por %p84, %p85
      %p87 = scmp.ne.s32.totalorder %s75, %s76
      %p88 = scmp.eq.s32.totalorder %s24, 1
      %p89 = por %p87, %p88
      %p91 = scmp.ne.s32.totalorder %s76, %s90
      %p92 = scmp.eq.s32.totalorder %s24, 0
      %p93 = por %p91, %p92
      %s95 = sadd.s32 %s94, 1
      %p98 = scmp.eq.s32.totalorder %s18, 1
      %p99 = scmp.ne.s32.totalorder %s94, %s96
      %p100 = scmp.eq.s32.totalorder %s18, 0
      %p101 = por %p99, %p100
      %p102 = scmp.ne.s32.totalorder %s94, %s96
      %p103 = scmp.eq.s32.totalorder %s23, 1
      %p104 = por %p102, %p103
      %p105 = scmp.ne.s32.totalorder %s96, %s97
      %p106 = scmp.eq.s32.totalorder %s23, 0
      %p107 = por %p105, %p106
      %p108 = scmp.ne.s32.totalorder %s96, %s97
      %p109 = scmp.eq.s32.totalorder %s24, 1
      %p110 = por %p108, %p109
      %p112 = scmp.ne.s32.totalorder %s97, %s111
      %p113 = scmp.eq.s32.totalorder %s24, 0
      %p114 = por %p112, %p113
      %s116 = sadd.s32 %s115, 1
      %p119 = scmp.eq.s32.totalorder %s18, 1
      %p120 = scmp.ne.s32.totalorder %s115, %s117
      %p121 = scmp.eq.s32.totalorder %s18, 0
      %p122 = por %p120, %p121
      %p123 = scmp.ne.s32.totalorder %s115, %s117
      %p124 = scmp.eq.s32.totalorder %s23, 1
      %p125 = por %p123, %p124
      %p126 = scmp.ne.s32.totalorder %s117, %s118
      %p127 = scmp.eq.s32.totalorder %s23, 0
      %p128 = por %p126, %p127
      %p129 = scmp.ne.s32.totalorder %s117, %s118
      %p130 = scmp.eq.s32.totalorder %s24, 1
      %p131 = por %p129, %p130
      %p133 = scmp.ne.s32.totalorder %s118, %s132
      %p134 = scmp.eq.s32.totalorder %s24, 0
      %p135 = por %p133, %p134
      %s137 = sadd.s32 %s136, 1
      %p140 = scmp.eq.s32.totalorder %s18, 1
      %p141 = scmp.ne.s32.totalorder %s136, %s138
      %p142 = scmp.eq.s32.totalorder %s18, 0
      %p143 = por %p141, %p142
      %p144 = scmp.ne.s32.totalorder %s136, %s138
      %p145 = scmp.eq.s32.totalorder %s23, 1
      %p146 = por %p144, %p145
      %p147 = scmp.ne.s32.totalorder %s138, %s139
      %p148 = scmp.eq.s32.totalorder %s23, 0
      %p149 = por %p147, %p148
      %p150 = scmp.ne.s32.totalorder %s138, %s139
      %p151 = scmp.eq.s32.totalorder %s24, 1
      %p152 = por %p150, %p151
      %p154 = scmp.ne.s32.totalorder %s139, %s153
      %p155 = scmp.eq.s32.totalorder %s24, 0
      %p156 = por %p154, %p155
      %s158 = sadd.s32 %s157, 1
      %p161 = scmp.eq.s32.totalorder %s18, 1
      %p162 = scmp.ne.s32.totalorder %s157, %s159
      %p163 = scmp.eq.s32.totalorder %s18, 0
      %p164 = por %p162, %p163
      %p165 = scmp.ne.s32.totalorder %s157, %s159
      %p166 = scmp.eq.s32.totalorder %s23, 1
      %p167 = por %p165, %p166
      %p168 = scmp.ne.s32.totalorder %s159, %s160
      %p169 = scmp.eq.s32.totalorder %s23, 0
      %p170 = por %p168, %p169
      %p171 = scmp.ne.s32.totalorder %s159, %s160
      %p172 = scmp.eq.s32.totalorder %s24, 1
      %p173 = por %p171, %p172
      %p175 = scmp.ne.s32.totalorder %s160, %s174
      %p176 = scmp.eq.s32.totalorder %s24, 0
      %p177 = por %p175, %p176
      %s178 = ssub.s32 %s18, %s25
      %p179 = scmp.eq.s32.totalorder %s178, 0
      %s181 = sadd.s32 %s180, 1
      %s182 = scalar_select %p179, %s180, %s181
      %p185 = pneg %p179
      %p186 = scmp.eq.s32.totalorder %s18, 1
      %p187 = por %p185, %p186
      %p188 = scmp.ne.s32.totalorder %s180, %s183
      %p189 = scmp.eq.s32.totalorder %s18, 0
      %p190 = por %p188, %p189
      %p191 = scmp.ne.s32.totalorder %s180, %s183
      %p192 = scmp.eq.s32.totalorder %s23, 1
      %p193 = por %p191, %p192
      %p194 = scmp.ne.s32.totalorder %s183, %s184
      %p195 = scmp.eq.s32.totalorder %s23, 0
      %p196 = por %p194, %p195
      %p197 = scmp.ne.s32.totalorder %s183, %s184
      %p198 = scmp.eq.s32.totalorder %s24, 1
      %p199 = por %p197, %p198
      %p201 = scmp.ne.s32.totalorder %s184, %s200
      %p202 = scmp.eq.s32.totalorder %s24, 0
      %p203 = por %p201, %p202
      %p204 = scmp.le.s32.totalorder 1, %s18
      %p205 = scmp.lt.s32.totalorder %s18, 3
      %p206 = pnand %p204, %p205
      %p207 = pneg %p206
      // Predicated region
      $region9: #{tpu_custom_call.1} parent=5 // pred_check
        _
      $region10: #{tpu_custom_call.1} parent=5 // pred_check_branch
        %209 = sbr.rel (%p206) target = $region12
      $region11: #{tpu_custom_call.1} parent=5 // pred_region
        %s210 = ssub.s32 %s18, 1
        // Predicated region
        $region13: #{tpu_custom_call.1} parent=11 // pred_check
          %p211 = pneg %p65
        $region14: #{tpu_custom_call.1} parent=11 // pred_check_branch
          %213 = sbr.rel (%p211) target = $region16
        $region15: #{tpu_custom_call.1} parent=11 // pred_region
          _
        $region16: #{tpu_custom_call.1} parent=11 // pred_fallthru
          _
        // Predicated region
        $region17: #{tpu_custom_call.1} parent=11 // pred_check
          %p214 = pneg %p86
        $region18: #{tpu_custom_call.1} parent=11 // pred_check_branch
          %216 = sbr.rel (%p214) target = $region20
        $region19: #{tpu_custom_call.1} parent=11 // pred_region
          _
        $region20: #{tpu_custom_call.1} parent=11 // pred_fallthru
          _
        // Predicated region
        $region21: #{tpu_custom_call.1} parent=11 // pred_check
          %p217 = pneg %p107
        $region22: #{tpu_custom_call.1} parent=11 // pred_check_branch
          %219 = sbr.rel (%p217) target = $region24
        $region23: #{tpu_custom_call.1} parent=11 // pred_region
          %s221 = ssub.s32 2048, 2048
          %222 = vsyncadd [#allocation3], %s221
          %s223 = sshll.u32 [#allocation2], 4
          %s224 = int_to_ptr.vmem [resolvable:$true] %s223
          %229 = dma.hbm_to_vmem [thread:$0]  %s3, 2048, %s224, [#allocation3], 128, 128, 8
        $region24: #{tpu_custom_call.1} parent=11 // pred_fallthru
          _
        // Predicated region
        $region25: #{tpu_custom_call.1} parent=11 // pred_check
          %p230 = pneg %p128
        $region26: #{tpu_custom_call.1} parent=11 // pred_check_branch
          %232 = sbr.rel (%p230) target = $region28
        $region27: #{tpu_custom_call.1} parent=11 // pred_region
          _
        $region28: #{tpu_custom_call.1} parent=11 // pred_fallthru
          _
        // Predicated region
        $region29: #{tpu_custom_call.1} parent=11 // pred_check
          %p233 = pneg %p149
        $region30: #{tpu_custom_call.1} parent=11 // pred_check_branch
          %235 = sbr.rel (%p233) target = $region32
        $region31: #{tpu_custom_call.1} parent=11 // pred_region
          %s237 = ssub.s32 2048, 2048
          %238 = vsyncadd [#allocation6], %s237
          %s239 = sshll.u32 [#allocation5], 4
          %s240 = int_to_ptr.vmem [resolvable:$true] %s239
          %245 = dma.hbm_to_vmem [thread:$0]  %s5, 2048, %s240, [#allocation6], 128, 128, 8
        $region32: #{tpu_custom_call.1} parent=11 // pred_fallthru
          _
        // Predicated region
        $region33: #{tpu_custom_call.1} parent=11 // pred_check
          %p246 = pneg %p170
        $region34: #{tpu_custom_call.1} parent=11 // pred_check_branch
          %248 = sbr.rel (%p246) target = $region36
        $region35: #{tpu_custom_call.1} parent=11 // pred_region
          _
        $region36: #{tpu_custom_call.1} parent=11 // pred_fallthru
          _
      $region12: #{tpu_custom_call.1} parent=5 // pred_fallthru
        _
      %p249 = scmp.lt.s32.totalorder %s18, 2
      // Predicated region
      $region37: #{tpu_custom_call.1} parent=5 // pred_check
        %p250 = pneg %p249
      $region38: #{tpu_custom_call.1} parent=5 // pred_check_branch
        %252 = sbr.rel (%p250) target = $region40
      $region39: #{tpu_custom_call.1} parent=5 // pred_region
        // Predicated region
        $region41: #{tpu_custom_call.1} parent=39 // pred_check
          %p253 = pneg %p38
        $region42: #{tpu_custom_call.1} parent=39 // pred_check_branch
          %255 = sbr.rel (%p253) target = $region44
        $region43: #{tpu_custom_call.1} parent=39 // pred_region
          %s256 = smul.u32 4, %s18
          %p257 = scmp.lt.s32.totalorder %s256, 7
          %s258 = scalar_select %p257, %s256, 7
          %s259 = smul.addr %s258, 8
          %s260 = scalar_lea.vmem %s0, %s259
          %s261 = smul.u32 4, %s18
        $region44: #{tpu_custom_call.1} parent=39 // pred_fallthru
          _
      $region40: #{tpu_custom_call.1} parent=5 // pred_fallthru
        _
      %p262 = scmp.le.s32.totalorder 1, %s18
      %p263 = scmp.lt.s32.totalorder %s18, 3
      %p264 = pnand %p262, %p263
      %p265 = pneg %p264
      // Predicated region
      $region45: #{tpu_custom_call.1} parent=5 // pred_check
        _
      $region46: #{tpu_custom_call.1} parent=5 // pred_check_branch
        %267 = sbr.rel (%p264) target = $region48
      $region47: #{tpu_custom_call.1} parent=5 // pred_region
        %s268 = ssub.s32 %s18, 1
        // Predicated region
        $region49: #{tpu_custom_call.1} parent=47 // pred_check
          %p269 = pneg %p107
        $region50: #{tpu_custom_call.1} parent=47 // pred_check_branch
          %271 = sbr.rel (%p269) target = $region52
        $region51: #{tpu_custom_call.1} parent=47 // pred_region
          %272 = dma.done [#allocation3], 2048
        $region52: #{tpu_custom_call.1} parent=47 // pred_fallthru
          _
        // Predicated region
        $region53: #{tpu_custom_call.1} parent=47 // pred_check
          %p273 = pneg %p149
        $region54: #{tpu_custom_call.1} parent=47 // pred_check_branch
          %275 = sbr.rel (%p273) target = $region56
        $region55: #{tpu_custom_call.1} parent=47 // pred_region
          %276 = dma.done [#allocation6], 2048
        $region56: #{tpu_custom_call.1} parent=47 // pred_fallthru
          _
        %s277 = smul.u32 4, %s23
        %p278 = scmp.lt.s32.totalorder %s277, 7
        %s279 = scalar_select %p278, %s277, 7
        %s280 = smul.addr %s279, 8
        %s281 = scalar_lea.vmem %s0, %s280
        %p282 = pneg %p44
        %p283 = pneg %p41
        %p284 = pneg %p65
        %p285 = pneg %p62
        %p286 = pneg %p86
        %p287 = pneg %p83
        %p288 = pneg %p107
        %p289 = pneg %p104
        %p290 = pneg %p128
        %p291 = pneg %p125
        %p292 = pneg %p149
        %p293 = pneg %p146
        %p294 = pneg %p170
        %p295 = pneg %p167
        %p296 = pneg %p196
        %p297 = pneg %p193
        %s298 = sand.u32 %s183, 1
        %s299 = scalar_lea.sflag [#allocation4], %s298
        %s300 = sand.u32 %s183, 1
        %s301 = smul.addr %s300, 32
        %s302 = scalar_lea.vmem [#allocation7], %s301
        %s303 = smul.u32 4, %s23
        %p304 = scmp.lt.s32.totalorder %s303, 7
        %s305 = scalar_select %p304, %s303, 7
        %s306 = smul.addr %s305, 8
        %s307 = scalar_lea.vmem %s0, %s306
        %s308 = smul.u32 4, %s23
        %s309 = smul.u32 4, %s23
        %v310 = vld [vmem:[%s307] sm:$0xff]
        %v311 = vld [vmem:[%s307 + $0x8] sm:$0xff]
        %v312 = vld [vmem:[%s307 + $0x10] sm:$0xff]
        %v313 = vld [vmem:[%s307 + $0x18] sm:$0xff]
        %v314 = vld [vmem:[%s1] sm:$0xff]
        %v315 = vld [vmem:[%s2] sm:$0x1]
        %v317 = vlaneseq
        %v318 = vshrl.u32 %v317, 7
        %v319 = vsub.s32 0, %v318
        %v320 = vrot.slane %v315, %v319
        %vm322 = vcmask 64512
        %v324 = vsel %vm322, %v310, 0
        %v327 = vsel %vm322, %v311, 0
        %v330 = vsel %vm322, %v312, 0
        %v333 = vsel %vm322, %v313, 0
        %335 = vmatprep.subr.mxu0 0.0
        %336 = vmatpush1.msra.mxu0 %v314
        %337 = vmatprep.subr.mxu0 0.0
        %338 = vmatpush1.msra.mxu0 0.0
        %339 = vmatprep.subr.mxu0 0.0
        %340 = vmatpush1.msra.mxu0 0.0
        %341 = vmatprep.subr.mxu0 0.0
        %342 = vmatpush1.msra.mxu0 0.0
        %343 = vmatprep.subr.mxu0 0.0
        %344 = vmatpush1.msra.mxu0 0.0
        %345 = vmatprep.subr.mxu0 0.0
        %346 = vmatpush1.msra.mxu0 0.0
        %347 = vmatprep.subr.mxu0 0.0
        %348 = vmatpush1.msra.mxu0 0.0
        %349 = vmatprep.subr.mxu0 0.0
        %350 = vmatpush1.msra.mxu0 0.0
        %351 = vmatprep.subr.mxu0 0.0
        %352 = vmatpush1.msra.mxu0 0.0
        %353 = vmatprep.subr.mxu0 0.0
        %354 = vmatpush1.msra.mxu0 0.0
        %355 = vmatprep.subr.mxu0 0.0
        %356 = vmatpush1.msra.mxu0 0.0
        %357 = vmatprep.subr.mxu0 0.0
        %358 = vmatpush1.msra.mxu0 0.0
        %359 = vmatprep.subr.mxu0 0.0
        %360 = vmatpush1.msra.mxu0 0.0
        %361 = vmatprep.subr.mxu0 0.0
        %362 = vmatpush1.msra.mxu0 0.0
        %363 = vmatprep.subr.mxu0 0.0
        %364 = vmatpush1.msra.mxu0 0.0
        %365 = vmatprep.subr.mxu0 0.0
        %366 = vmatpush1.msra.mxu0 0.0
        %367 = vmatprep.subr.mxu0 0.0
        %368 = vmatpush1.msra.mxu0 0.0
        %369 = vmatprep.subr.mxu0 0.0
        %370 = vmatpush1.msra.mxu0 0.0
        %371 = vmatprep.subr.mxu0 0.0
        %372 = vmatpush1.msra.mxu0 0.0
        %373 = vmatprep.subr.mxu0 0.0
        %374 = vmatpush1.msra.mxu0 0.0
        %375 = vmatprep.subr.mxu0 0.0
        %376 = vmatpush1.msra.mxu0 0.0
        %377 = vmatprep.subr.mxu0 0.0
        %378 = vmatpush1.msra.mxu0 0.0
        %379 = vmatprep.subr.mxu0 0.0
        %380 = vmatpush1.msra.mxu0 0.0
        %381 = vmatprep.subr.mxu0 0.0
        %382 = vmatpush1.msra.mxu0 0.0
        %383 = vmatprep.subr.mxu0 0.0
        %384 = vmatpush1.msra.mxu0 0.0
        %385 = vmatprep.subr.mxu0 0.0
        %386 = vmatpush1.msra.mxu0 0.0
        %387 = vmatprep.subr.mxu0 0.0
        %388 = vmatpush1.msra.mxu0 0.0
        %389 = vmatprep.subr.mxu0 0.0
        %390 = vmatpush1.msra.mxu0 0.0
        %391 = vmatprep.subr.mxu0 0.0
        %392 = vmatpush1.msra.mxu0 0.0
        %393 = vmatprep.subr.mxu0 0.0
        %394 = vmatpush1.msra.mxu0 0.0
        %395 = vmatprep.subr.mxu0 0.0
        %396 = vmatpush1.msra.mxu0 0.0
        %397 = vmatprep.subr.mxu0 0.0
        %398 = vmatpush1.msra.mxu0 0.0
        %399 = vmatprep.mubr.f32.mxu0 0.0
        %400 = vmatmul.mubr.f32.gmra.mrb[0].mxu0 %v324
        %v401 = vpop.f32.mrb[0].mxu0
        %v402 = vadd.f32 %v320, %v401
        %v403 = vpop.f32.mrb[0].mxu0
        %404 = vmatprep.mubr.f32.mxu0 0.0
        %405 = vmatmul.mubr.f32.gmra.mrb[0].mxu0 %v327
        %v406 = vpop.f32.mrb[0].mxu0
        %v407 = vadd.f32 %v320, %v406
        %v408 = vpop.f32.mrb[0].mxu0
        %409 = vmatprep.mubr.f32.mxu0 0.0
        %410 = vmatmul.mubr.f32.gmra.mrb[0].mxu0 %v330
        %v411 = vpop.f32.mrb[0].mxu0
        %v412 = vadd.f32 %v320, %v411
        %v413 = vpop.f32.mrb[0].mxu0
        %414 = vmatprep.mubr.f32.mxu0 0.0
        %415 = vmatmul.mubr.f32.gmra.mrb[0].mxu0 %v333
        %v416 = vpop.f32.mrb[0].mxu0
        %v417 = vadd.f32 %v320, %v416
        %v418 = vpop.f32.mrb[0].mxu0
        %419 = vdwg.mxu0
        %v420 = vmul.f32 %v402, 0.01
        %v421 = vmul.f32 %v407, 0.01
        %v422 = vmul.f32 %v412, 0.01
        %v423 = vmul.f32 %v417, 0.01
        %v424 = vmax.f32 %v402, %v420
        %v425 = vmax.f32 %v407, %v421
        %v426 = vmax.f32 %v412, %v422
        %v427 = vmax.f32 %v417, %v423
        %v428 = vld [vmem:[#allocation2] sm:$0xff]
        %v429 = vld [vmem:[#allocation2 + $0x8] sm:$0xff]
        %v430 = vld [vmem:[#allocation2 + $0x10] sm:$0xff]
        %v431 = vld [vmem:[#allocation2 + $0x18] sm:$0xff]
        %v432 = vld [vmem:[#allocation2 + $0x20] sm:$0xff]
        %v433 = vld [vmem:[#allocation2 + $0x28] sm:$0xff]
        %v434 = vld [vmem:[#allocation2 + $0x30] sm:$0xff]
        %v435 = vld [vmem:[#allocation2 + $0x38] sm:$0xff]
        %v436 = vld [vmem:[#allocation2 + $0x40] sm:$0xff]
        %v437 = vld [vmem:[#allocation2 + $0x48] sm:$0xff]
        %v438 = vld [vmem:[#allocation2 + $0x50] sm:$0xff]
        %v439 = vld [vmem:[#allocation2 + $0x58] sm:$0xff]
        %v440 = vld [vmem:[#allocation2 + $0x60] sm:$0xff]
        %v441 = vld [vmem:[#allocation2 + $0x68] sm:$0xff]
        %v442 = vld [vmem:[#allocation2 + $0x70] sm:$0xff]
        %v443 = vld [vmem:[#allocation2 + $0x78] sm:$0xff]
        %v444 = vld [vmem:[%s4] sm:$0x1]
        %v446 = vlaneseq
        %v447 = vshrl.u32 %v446, 7
        %v448 = vsub.s32 0, %v447
        %v449 = vrot.slane %v444, %v448
        %451 = vmatprep.subr.mxu0 0.0
        %452 = vmatpush1.msra.mxu0 %v428
        %453 = vmatprep.subr.mxu0 0.0
        %454 = vmatpush1.msra.mxu0 %v429
        %455 = vmatprep.subr.mxu0 0.0
        %456 = vmatpush1.msra.mxu0 %v430
        %457 = vmatprep.subr.mxu0 0.0
        %458 = vmatpush1.msra.mxu0 %v431
        %459 = vmatprep.subr.mxu0 0.0
        %460 = vmatpush1.msra.mxu0 %v432
        %461 = vmatprep.subr.mxu0 0.0
        %462 = vmatpush1.msra.mxu0 %v433
        %463 = vmatprep.subr.mxu0 0.0
        %464 = vmatpush1.msra.mxu0 %v434
        %465 = vmatprep.subr.mxu0 0.0
        %466 = vmatpush1.msra.mxu0 %v435
        %467 = vmatprep.subr.mxu0 0.0
        %468 = vmatpush1.msra.mxu0 %v436
        %469 = vmatprep.subr.mxu0 0.0
        %470 = vmatpush1.msra.mxu0 %v437
        %471 = vmatprep.subr.mxu0 0.0
        %472 = vmatpush1.msra.mxu0 %v438
        %473 = vmatprep.subr.mxu0 0.0
        %474 = vmatpush1.msra.mxu0 %v439
        %475 = vmatprep.subr.mxu0 0.0
        %476 = vmatpush1.msra.mxu0 %v440
        %477 = vmatprep.subr.mxu0 0.0
        %478 = vmatpush1.msra.mxu0 %v441
        %479 = vmatprep.subr.mxu0 0.0
        %480 = vmatpush1.msra.mxu0 %v442
        %481 = vmatprep.subr.mxu0 0.0
        %482 = vmatpush1.msra.mxu0 %v443
        %483 = vmatprep.subr.mxu0 0.0
        %484 = vmatpush1.msra.mxu0 0.0
        %485 = vmatprep.subr.mxu0 0.0
        %486 = vmatpush1.msra.mxu0 0.0
        %487 = vmatprep.subr.mxu0 0.0
        %488 = vmatpush1.msra.mxu0 0.0
        %489 = vmatprep.subr.mxu0 0.0
        %490 = vmatpush1.msra.mxu0 0.0
        %491 = vmatprep.subr.mxu0 0.0
        %492 = vmatpush1.msra.mxu0 0.0
        %493 = vmatprep.subr.mxu0 0.0
        %494 = vmatpush1.msra.mxu0 0.0
        %495 = vmatprep.subr.mxu0 0.0
        %496 = vmatpush1.msra.mxu0 0.0
        %497 = vmatprep.subr.mxu0 0.0
        %498 = vmatpush1.msra.mxu0 0.0
        %499 = vmatprep.subr.mxu0 0.0
        %500 = vmatpush1.msra.mxu0 0.0
        %501 = vmatprep.subr.mxu0 0.0
        %502 = vmatpush1.msra.mxu0 0.0
        %503 = vmatprep.subr.mxu0 0.0
        %504 = vmatpush1.msra.mxu0 0.0
        %505 = vmatprep.subr.mxu0 0.0
        %506 = vmatpush1.msra.mxu0 0.0
        %507 = vmatprep.subr.mxu0 0.0
        %508 = vmatpush1.msra.mxu0 0.0
        %509 = vmatprep.subr.mxu0 0.0
        %510 = vmatpush1.msra.mxu0 0.0
        %511 = vmatprep.subr.mxu0 0.0
        %512 = vmatpush1.msra.mxu0 0.0
        %513 = vmatprep.subr.mxu0 0.0
        %514 = vmatpush1.msra.mxu0 0.0
        %515 = vmatprep.mubr.f32.mxu0 0.0
        %516 = vmatmul.mubr.f32.gmra.mrb[0].mxu0 %v424
        %v517 = vpop.f32.mrb[0].mxu0
        %v518 = vadd.f32 %v449, %v517
        %v519 = vpop.f32.mrb[0].mxu0
        %520 = vmatprep.mubr.f32.mxu0 0.0
        %521 = vmatmul.mubr.f32.gmra.mrb[0].mxu0 %v425
        %v522 = vpop.f32.mrb[0].mxu0
        %v523 = vadd.f32 %v449, %v522
        %v524 = vpop.f32.mrb[0].mxu0
        %525 = vmatprep.mubr.f32.mxu0 0.0
        %526 = vmatmul.mubr.f32.gmra.mrb[0].mxu0 %v426
        %v527 = vpop.f32.mrb[0].mxu0
        %v528 = vadd.f32 %v449, %v527
        %v529 = vpop.f32.mrb[0].mxu0
        %530 = vmatprep.mubr.f32.mxu0 0.0
        %531 = vmatmul.mubr.f32.gmra.mrb[0].mxu0 %v427
        %v532 = vpop.f32.mrb[0].mxu0
        %v533 = vadd.f32 %v449, %v532
        %v534 = vpop.f32.mrb[0].mxu0
        %535 = vdwg.mxu0
        %v536 = vmul.f32 %v518, 0.01
        %v537 = vmul.f32 %v523, 0.01
        %v538 = vmul.f32 %v528, 0.01
        %v539 = vmul.f32 %v533, 0.01
        %v540 = vmax.f32 %v518, %v536
        %v541 = vmax.f32 %v523, %v537
        %v542 = vmax.f32 %v528, %v538
        %v543 = vmax.f32 %v533, %v539
        %v544 = vld [vmem:[#allocation5] sm:$0xff]
        %v545 = vld [vmem:[#allocation5 + $0x8] sm:$0xff]
        %v546 = vld [vmem:[#allocation5 + $0x10] sm:$0xff]
        %v547 = vld [vmem:[#allocation5 + $0x18] sm:$0xff]
        %v548 = vld [vmem:[#allocation5 + $0x20] sm:$0xff]
        %v549 = vld [vmem:[#allocation5 + $0x28] sm:$0xff]
        %v550 = vld [vmem:[#allocation5 + $0x30] sm:$0xff]
        %v551 = vld [vmem:[#allocation5 + $0x38] sm:$0xff]
        %v552 = vld [vmem:[#allocation5 + $0x40] sm:$0xff]
        %v553 = vld [vmem:[#allocation5 + $0x48] sm:$0xff]
        %v554 = vld [vmem:[#allocation5 + $0x50] sm:$0xff]
        %v555 = vld [vmem:[#allocation5 + $0x58] sm:$0xff]
        %v556 = vld [vmem:[#allocation5 + $0x60] sm:$0xff]
        %v557 = vld [vmem:[#allocation5 + $0x68] sm:$0xff]
        %v558 = vld [vmem:[#allocation5 + $0x70] sm:$0xff]
        %v559 = vld [vmem:[#allocation5 + $0x78] sm:$0xff]
        %v560 = vld [vmem:[%s6] sm:$0x1]
        %v562 = vlaneseq
        %v563 = vshrl.u32 %v562, 7
        %v564 = vsub.s32 0, %v563
        %v565 = vrot.slane %v560, %v564
        %567 = vmatprep.subr.mxu0 0.0
        %568 = vmatpush1.msra.mxu0 %v544
        %569 = vmatprep.subr.mxu0 0.0
        %570 = vmatpush1.msra.mxu0 %v545
        %571 = vmatprep.subr.mxu0 0.0
        %572 = vmatpush1.msra.mxu0 %v546
        %573 = vmatprep.subr.mxu0 0.0
        %574 = vmatpush1.msra.mxu0 %v547
        %575 = vmatprep.subr.mxu0 0.0
        %576 = vmatpush1.msra.mxu0 %v548
        %577 = vmatprep.subr.mxu0 0.0
        %578 = vmatpush1.msra.mxu0 %v549
        %579 = vmatprep.subr.mxu0 0.0
        %580 = vmatpush1.msra.mxu0 %v550
        %581 = vmatprep.subr.mxu0 0.0
        %582 = vmatpush1.msra.mxu0 %v551
        %583 = vmatprep.subr.mxu0 0.0
        %584 = vmatpush1.msra.mxu0 %v552
        %585 = vmatprep.subr.mxu0 0.0
        %586 = vmatpush1.msra.mxu0 %v553
        %587 = vmatprep.subr.mxu0 0.0
        %588 = vmatpush1.msra.mxu0 %v554
        %589 = vmatprep.subr.mxu0 0.0
        %590 = vmatpush1.msra.mxu0 %v555
        %591 = vmatprep.subr.mxu0 0.0
        %592 = vmatpush1.msra.mxu0 %v556
        %593 = vmatprep.subr.mxu0 0.0
        %594 = vmatpush1.msra.mxu0 %v557
        %595 = vmatprep.subr.mxu0 0.0
        %596 = vmatpush1.msra.mxu0 %v558
        %597 = vmatprep.subr.mxu0 0.0
        %598 = vmatpush1.msra.mxu0 %v559
        %599 = vmatprep.subr.mxu0 0.0
        %600 = vmatpush1.msra.mxu0 0.0
        %601 = vmatprep.subr.mxu0 0.0
        %602 = vmatpush1.msra.mxu0 0.0
        %603 = vmatprep.subr.mxu0 0.0
        %604 = vmatpush1.msra.mxu0 0.0
        %605 = vmatprep.subr.mxu0 0.0
        %606 = vmatpush1.msra.mxu0 0.0
        %607 = vmatprep.subr.mxu0 0.0
        %608 = vmatpush1.msra.mxu0 0.0
        %609 = vmatprep.subr.mxu0 0.0
        %610 = vmatpush1.msra.mxu0 0.0
        %611 = vmatprep.subr.mxu0 0.0
        %612 = vmatpush1.msra.mxu0 0.0
        %613 = vmatprep.subr.mxu0 0.0
        %614 = vmatpush1.msra.mxu0 0.0
        %615 = vmatprep.subr.mxu0 0.0
        %616 = vmatpush1.msra.mxu0 0.0
        %617 = vmatprep.subr.mxu0 0.0
        %618 = vmatpush1.msra.mxu0 0.0
        %619 = vmatprep.subr.mxu0 0.0
        %620 = vmatpush1.msra.mxu0 0.0
        %621 = vmatprep.subr.mxu0 0.0
        %622 = vmatpush1.msra.mxu0 0.0
        %623 = vmatprep.subr.mxu0 0.0
        %624 = vmatpush1.msra.mxu0 0.0
        %625 = vmatprep.subr.mxu0 0.0
        %626 = vmatpush1.msra.mxu0 0.0
        %627 = vmatprep.subr.mxu0 0.0
        %628 = vmatpush1.msra.mxu0 0.0
        %629 = vmatprep.subr.mxu0 0.0
        %630 = vmatpush1.msra.mxu0 0.0
        %631 = vmatprep.mubr.f32.mxu0 0.0
        %632 = vmatmul.mubr.f32.gmra.mrb[0].mxu0 %v540
        %v633 = vpop.f32.mrb[0].mxu0
        %v634 = vadd.f32 %v565, %v633
        %v635 = vpop.f32.mrb[0].mxu0
        %636 = vmatprep.mubr.f32.mxu0 0.0
        %637 = vmatmul.mubr.f32.gmra.mrb[0].mxu0 %v541
        %v638 = vpop.f32.mrb[0].mxu0
        %v639 = vadd.f32 %v565, %v638
        %v640 = vpop.f32.mrb[0].mxu0
        %641 = vmatprep.mubr.f32.mxu0 0.0
        %642 = vmatmul.mubr.f32.gmra.mrb[0].mxu0 %v542
        %v643 = vpop.f32.mrb[0].mxu0
        %v644 = vadd.f32 %v565, %v643
        %v645 = vpop.f32.mrb[0].mxu0
        %646 = vmatprep.mubr.f32.mxu0 0.0
        %647 = vmatmul.mubr.f32.gmra.mrb[0].mxu0 %v543
        %v648 = vpop.f32.mrb[0].mxu0
        %v649 = vadd.f32 %v565, %v648
        %v650 = vpop.f32.mrb[0].mxu0
        %651 = vdwg.mxu0
        %652 = vst [vmem:[%s302] sm:$0xff] %v634
        %653 = vst [vmem:[%s302 + $0x8] sm:$0xff] %v639
        %654 = vst [vmem:[%s302 + $0x10] sm:$0xff] %v644
        %655 = vst [vmem:[%s302 + $0x18] sm:$0xff] %v649
        %s656 = sand.u32 %s183, 1
        %s657 = scalar_lea.sflag [#allocation4], %s656
        %s658 = sand.u32 %s183, 1
        %s659 = smul.addr %s658, 32
        %s660 = scalar_lea.vmem [#allocation7], %s659
        // Predicated region
        $region57: #{tpu_custom_call.1} parent=47 // pred_check
          %p661 = pneg %p193
        $region58: #{tpu_custom_call.1} parent=47 // pred_check_branch
          %663 = sbr.rel (%p661) target = $region60
        $region59: #{tpu_custom_call.1} parent=47 // pred_region
          %s664 = smul.u32 4, %s23
          %s666 = ssub.s32 512, 512
          %667 = vsyncadd %s657, %s666
          %s668 = smul.addr %s664, 128
          %s669 = scalar_lea.hbm %s7, %s668
          %s670 = sshll.u32 %s660, 4
          %s671 = int_to_ptr.vmem [resolvable:$true] %s670
          %676 = dma.vmem_to_hbm [thread:$0]  %s671, 512, %s669, %s657, 128, 128, 8
        $region60: #{tpu_custom_call.1} parent=47 // pred_fallthru
          _
      $region48: #{tpu_custom_call.1} parent=5 // pred_fallthru
        _
      %p677 = scmp.le.s32.totalorder 2, %s18
      // Predicated region
      $region61: #{tpu_custom_call.1} parent=5 // pred_check
        %p678 = pneg %p677
      $region62: #{tpu_custom_call.1} parent=5 // pred_check_branch
        %680 = sbr.rel (%p678) target = $region64
      $region63: #{tpu_custom_call.1} parent=5 // pred_region
        %s681 = ssub.s32 %s18, 2
        // Predicated region
        $region65: #{tpu_custom_call.1} parent=63 // pred_check
          %p682 = pneg %p199
        $region66: #{tpu_custom_call.1} parent=63 // pred_check_branch
          %684 = sbr.rel (%p682) target = $region68
        $region67: #{tpu_custom_call.1} parent=63 // pred_region
          %s685 = sand.u32 %s184, 1
          %s686 = scalar_lea.sflag [#allocation4], %s685
          %s687 = sand.u32 %s184, 1
          %s688 = smul.addr %s687, 32
          %s689 = scalar_lea.vmem [#allocation7], %s688
          %690 = dma.done %s686, 512
        $region68: #{tpu_custom_call.1} parent=63 // pred_fallthru
          _
      $region64: #{tpu_custom_call.1} parent=5 // pred_fallthru
        _
    $region6: #{tpu_custom_call.1} parent=1 // loop_footer
      %s22 = sadd.s32 1, %s18
    $region7: #{tpu_custom_call.1} parent=1 // loop_footer_branch
      %17 = sbr.rel target = $region3
    $region8: #{tpu_custom_call.1} parent=1 // loop_exit
      _
    %691 = vsyncpa [#allocation3], 1
    %s692 = scalar_lea.sflag [#allocation3], 1
    %693 = vsyncpa %s692, 1
    %694 = vsyncpa [#allocation6], 1
    %695 = vsyncpa [#allocation4], 1
    %s696 = scalar_lea.sflag [#allocation4], 1
    %697 = vsyncpa %s696, 1

</llo_original>
